<compile_context>
chip_gen: v6e
topology: v6e:2x2x1
jax: 0.10.0
libtpu: 0.0.40
codegen_flags: <defaults>
</compile_context>

<pallas_src>
import functools

import jax
import jax.numpy as jnp
from jax.experimental import pallas as pl
from jax.experimental.pallas import tpu as pltpu

EPS = 1e-5


# ------------------------------ Pallas kernel ------------------------------ #

def _shift_hw(x, dh, dw):
    """y[h, w, :] = x[h+dh, w+dw, :], zero outside. x: [H, W, C] (any dtype).

    H shift is a leading-dim concat (vreg addressing only); W shift is a
    sublane concat (XLU relayout, no masked stores, no scratch)."""
    H, W, C = x.shape
    zeros = lambda nh, nw: jnp.zeros((nh, nw, C), x.dtype)
    if dh == -1:
        x = jnp.concatenate([zeros(1, W), x[:H - 1]], axis=0)
    elif dh == 1:
        x = jnp.concatenate([x[1:], zeros(1, W)], axis=0)
    if dw == -1:
        x = jnp.concatenate([zeros(H, 1), x[:, :W - 1, :]], axis=1)
    elif dw == 1:
        x = jnp.concatenate([x[:, 1:, :], zeros(H, 1)], axis=1)
    return x


def _residual_block_kernel(x_ref, w1_ref, w2_ref, sh1_ref, sh2_ref, *rest,
                           stride, Ho, Wo, Hph, has_projection):
    """One batch image per grid step; everything (out1, identity) stays in VMEM.

    x_ref   : [1, s*s*Hph, Wph, Cinp]  bf16  stride-phase stack of padded input
    w1_ref  : [9*Cinp, Coutp]  bf16  (BN1 scale folded in)
    w2_ref  : [9*Coutp, Coutp] bf16  (BN2 scale folded in)
    sh*_ref : [1, Coutp] f32 BN shifts
    rest    : (ws_ref [Cinp, Coutp], shs_ref [1, Coutp], o_ref) if projection
              else (o_ref,)
    o_ref   : [1, Ho, Wo, Coutp] bf16
    """
    if has_projection:
        ws_ref, shs_ref, o_ref = rest
    else:
        (o_ref,) = rest

    cinp = x_ref.shape[-1]
    coutp = o_ref.shape[-1]
    M = Ho * Wo

    def tap(kh, kw):
        # padded-input coordinate (s*ho + kh, s*wo + kw) -> phase block + offset
        ph = (kh % stride) * stride + (kw % stride)
        r0 = ph * Hph + kh // stride
        c0 = kw // stride
        return x_ref[0, r0:r0 + Ho, c0:c0 + Wo, :]          # [Ho, Wo, Cinp] bf16

    # ---- conv1 (3x3, stride s, pad 1) + bn1 + relu: one dot, K = 9*Cinp ----
    taps1 = [tap(kh, kw) for kh in range(3) for kw in range(3)]
    slab1 = jnp.concatenate(taps1, axis=-1).reshape(M, 9 * cinp)   # bf16
    acc1 = jnp.dot(slab1, w1_ref[...], preferred_element_type=jnp.float32)
    out1 = jnp.maximum(acc1 + sh1_ref[...], 0.0)                   # [M, Coutp] f32

    # ---- shortcut: static branch, reuses the (kh=1, kw=1) centre tap --------
    center = taps1[4].reshape(M, cinp)                              # bf16
    if has_projection:
        identity = jnp.dot(center, ws_ref[...],
                           preferred_element_type=jnp.float32) + shs_ref[...]
    else:
        # Cinp == Coutp here; direct add (no eye() matmul, no extra MXU pass).
        identity = center.astype(jnp.float32)

    # ---- conv2 (3x3, stride 1, pad 1) + bn2 + add + relu: one dot, K=9*Coutp
    out1_bf = out1.astype(jnp.bfloat16).reshape(Ho, Wo, coutp)      # cast once
    taps2 = [_shift_hw(out1_bf, kh - 1, kw - 1)
             for kh in range(3) for kw in range(3)]
    slab2 = jnp.concatenate(taps2, axis=-1).reshape(M, 9 * coutp)   # bf16
    acc2 = jnp.dot(slab2, w2_ref[...], preferred_element_type=jnp.float32)

    y = jnp.maximum(acc2 + sh2_ref[...] + identity, 0.0)
    o_ref[...] = y.reshape(1, Ho, Wo, coutp).astype(o_ref.dtype)


# ------------------------------- JAX wrapper -------------------------------- #

def _round_up(x, m):
    return (x + m - 1) // m * m


def _fold_bn(bias, gamma, beta, mean, var):
    scale = gamma / jnp.sqrt(var + EPS)
    shift = beta + (bias - mean) * scale
    return scale, shift


def _prep_conv3x3(w_oihw, scale, cinp, coutp):
    # torch OIHW [Cout, Cin, 3, 3]; fold BN scale into output channels.
    cout, cin = w_oihw.shape[0], w_oihw.shape[1]
    wf = w_oihw * scale[:, None, None, None]
    wf = jnp.transpose(wf, (2, 3, 1, 0)).reshape(9, cin, cout)       # tap = kh*3+kw
    wf = jnp.pad(wf, ((0, 0), (0, cinp - cin), (0, coutp - cout)))
    return wf.reshape(9 * cinp, coutp).astype(jnp.bfloat16)


def _prep_conv1x1(w_oihw, scale, cinp, coutp):
    cout, cin = w_oihw.shape[0], w_oihw.shape[1]
    wf = (w_oihw.reshape(cout, cin) * scale[:, None]).T              # [Cin, Cout]
    wf = jnp.pad(wf, ((0, cinp - cin), (0, coutp - cout)))
    return wf.astype(jnp.bfloat16)


def _pad_shift(shift, coutp):
    return jnp.pad(shift, (0, coutp - shift.shape[0])).reshape(1, coutp).astype(jnp.float32)


def _make_phase_stack(x_nhwc, stride, hph, wph, cinp):
    """Spatial pad=1 + channel pad, then stack the stride-phase subgrids along H.

    Result: [N, stride*stride*hph, wph, cinp] in the input dtype (bf16 here).
    Total bytes ~= padded input bytes (a rearrangement, NOT a 9x im2col)."""
    xp = jnp.pad(x_nhwc, ((0, 0), (1, 1), (1, 1), (0, cinp - x_nhwc.shape[-1])))
    phases = []
    for pr in range(stride):
        for pc in range(stride):
            p = xp[:, pr::stride, pc::stride, :]
            p = jnp.pad(p, ((0, 0), (0, hph - p.shape[1]),
                            (0, wph - p.shape[2]), (0, 0)))
            phases.append(p)
    return jnp.concatenate(phases, axis=1)


def _const_spec(shape):
    """BlockSpec for a grid-invariant operand: whole array, single-buffered."""
    index_map = lambda i: (0,) * len(shape)
    try:
        return pl.BlockSpec(shape, index_map, pipeline_mode=pl.Buffered(1))
    except TypeError:   # BlockSpec without pipeline_mode support
        return pl.BlockSpec(shape, index_map)


def _vmem_capacity_bytes():
    # Per-generation capacity (v7x has 64 MiB per TC vs 128 MiB on v5e/v6e).
    try:
        return int(pltpu.get_tpu_info().vmem_capacity_bytes)
    except Exception:
        return 64 * 1024 * 1024


@functools.partial(jax.jit, static_argnums=2)
def residual_block_forward(x_nchw, params, stride):
    """x: [N, Cin, H, W] (NCHW f32) -> [N, Cout, Ho, Wo] (NCHW f32)."""
    n, cin, h, w = x_nchw.shape
    cout = params["conv1_w"].shape[0]
    ho = (h + 2 - 3) // stride + 1
    wo = (w + 2 - 3) // stride + 1
    if wo % 8 != 0:
        raise ValueError(f"Wo={wo} must be a multiple of 8 (pad W in the wrapper)")
    cinp = _round_up(cin, 128)            # lane-dense LHS channels
    coutp = _round_up(cout, 128)          # lane-dense output channels
    s2 = stride * stride
    # NOTE: intentionally ho + floor(2/stride): max extra phase rows any 3x3 tap
    # can reach (2 for stride 1, 1 for stride 2).
    hph = ho + (2 // stride)
    wph = wo + (2 // stride)
    has_projection = (stride != 1) or (cin != cout)
    M = ho * wo

    # ---- one-time layout prep: NCHW f32 -> bf16 NHWC phase stack + BN folding
    x_nhwc = jnp.transpose(x_nchw, (0, 2, 3, 1)).astype(jnp.bfloat16)
    x_ph = _make_phase_stack(x_nhwc, stride, hph, wph, cinp)   # [N, s2*hph, wph, cinp]

    scale1, shift1 = _fold_bn(params["conv1_b"], params["bn1_g"], params["bn1_b"],
                              params["bn1_m"], params["bn1_v"])
    scale2, shift2 = _fold_bn(params["conv2_b"], params["bn2_g"], params["bn2_b"],
                              params["bn2_m"], params["bn2_v"])
    w1 = _prep_conv3x3(params["conv1_w"], scale1, cinp, coutp)     # [9*cinp, coutp]
    w2 = _prep_conv3x3(params["conv2_w"], scale2, coutp, coutp)    # [9*coutp, coutp]
    sh1 = _pad_shift(shift1, coutp)
    sh2 = _pad_shift(shift2, coutp)

    inputs = [x_ph, w1, w2, sh1, sh2]
    in_specs = [
        pl.BlockSpec((1, s2 * hph, wph, cinp), lambda i: (i, 0, 0, 0)),
        _const_spec((9 * cinp, coutp)),
        _const_spec((9 * coutp, coutp)),
        _const_spec((1, coutp)),
        _const_spec((1, coutp)),
    ]
    if has_projection:
        scales, shifts = _fold_bn(params["sc_b"], params["bns_g"], params["bns_b"],
                                  params["bns_m"], params["bns_v"])
        ws = _prep_conv1x1(params["sc_w"], scales, cinp, coutp)
        shs = _pad_shift(shifts, coutp)
        inputs += [ws, shs]
        in_specs += [_const_spec((cinp, coutp)), _const_spec((1, coutp))]

    # ---- per-step VMEM working set + explicit scoped-VMEM limit --------------
    bytes_in_blk = 2 * s2 * hph * wph * cinp * 2              # double-buffered bf16 input
    bytes_out_blk = 2 * M * coutp * 2                         # double-buffered bf16 output
    bytes_weights = ((9 * cinp + 9 * coutp + (cinp if has_projection else 0))
                     * coutp * 2 + 3 * coutp * 4)             # single-buffered
    bytes_live = M * (9 * cinp * 2 + 9 * coutp * 2 + 4 * coutp * 4)   # slabs + f32 accs
    per_step = bytes_in_blk + bytes_out_blk + bytes_weights + bytes_live
    cap = _vmem_capacity_bytes()
    if per_step > int(cap * 0.9):
        raise ValueError("ResidualBlock image tile does not fit VMEM "
                         f"(~{per_step} bytes/step, cap {cap}); add spatial tiling")
    vmem_limit = int(min(cap * 0.9, max(per_step * 3 // 2, 32 * 1024 * 1024)))

    proj_flops = (cinp if has_projection else 0)
    flops = 2 * n * M * coutp * (9 * cinp + 9 * coutp + proj_flops)
    bytes_accessed = (x_ph.size * 2 + w1.size * 2 + w2.size * 2
                      + (inputs[5].size * 2 if has_projection else 0)
                      + (sh1.size + sh2.size) * 4
                      + n * M * coutp * 2)

    kernel = functools.partial(_residual_block_kernel, stride=stride, Ho=ho,
                               Wo=wo, Hph=hph, has_projection=has_projection)

    out = pl.pallas_call(
        kernel,
        out_shape=jax.ShapeDtypeStruct((n, ho, wo, coutp), jnp.bfloat16),
        grid=(n,),
        in_specs=in_specs,
        out_specs=pl.BlockSpec((1, ho, wo, coutp), lambda i: (i, 0, 0, 0)),
        compiler_params=pltpu.CompilerParams(
            dimension_semantics=("parallel",),
            vmem_limit_bytes=vmem_limit),
        cost_estimate=pl.CostEstimate(flops=flops, transcendentals=0,
                                      bytes_accessed=bytes_accessed),
    )(*inputs)

    # Module-interface conversion only; chained blocks should consume the bf16
    # NHWC (channel-padded) pallas output directly and skip this transpose.
    return jnp.transpose(out[..., :cout].astype(jnp.float32), (0, 3, 1, 2))


# --------------------------- pure-JAX reference ----------------------------- #

def _ref_conv(x, w, b, stride, pad):
    y = jax.lax.conv_general_dilated(
        x, w, window_strides=(stride, stride),
        padding=[(pad, pad), (pad, pad)],
        dimension_numbers=("NCHW", "OIHW", "NCHW"))
    return y + b[None, :, None, None]


def _ref_bn(x, g, b, m, v):
    return ((x - m[None, :, None, None]) / jnp.sqrt(v[None, :, None, None] + EPS)
            * g[None, :, None, None] + b[None, :, None, None])


def residual_block_reference(x, params, stride):
    cin = x.shape[1]
    cout = params["conv1_w"].shape[0]
    out = _ref_conv(x, params["conv1_w"], params["conv1_b"], stride, 1)
    out = jax.nn.relu(_ref_bn(out, params["bn1_g"], params["bn1_b"],
                              params["bn1_m"], params["bn1_v"]))
    out = _ref_conv(out, params["conv2_w"], params["conv2_b"], 1, 1)
    out = _ref_bn(out, params["bn2_g"], params["bn2_b"],
                  params["bn2_m"], params["bn2_v"])
    if stride != 1 or cin != cout:
        ident = _ref_conv(x, params["sc_w"], params["sc_b"], stride, 0)
        ident = _ref_bn(ident, params["bns_g"], params["bns_b"],
                        params["bns_m"], params["bns_v"])
    else:
        ident = x
    return jax.nn.relu(out + ident)


# --------------------------------- main ------------------------------------- #

def init_params(key, cin, cout):
    ks = jax.random.split(key, 16)
    n = lambda k, s, sc=0.1: (jax.random.normal(k, s, jnp.float32) * sc)
    u = lambda k, s: jax.random.uniform(k, s, jnp.float32, 0.5, 1.5)
    return {
        "conv1_w": n(ks[0], (cout, cin, 3, 3)),  "conv1_b": n(ks[1], (cout,)),
        "bn1_g": u(ks[2], (cout,)), "bn1_b": n(ks[3], (cout,)),
        "bn1_m": n(ks[4], (cout,)), "bn1_v": u(ks[5], (cout,)),
        "conv2_w": n(ks[6], (cout, cout, 3, 3)), "conv2_b": n(ks[7], (cout,)),
        "bn2_g": u(ks[8], (cout,)), "bn2_b": n(ks[9], (cout,)),
        "bn2_m": n(ks[10], (cout,)), "bn2_v": u(ks[11], (cout,)),
        "sc_w": n(ks[12], (cout, cin, 1, 1)),    "sc_b": n(ks[13], (cout,)),
        "bns_g": u(ks[14], (cout,)), "bns_b": n(ks[15], (cout,)),
        "bns_m": jnp.zeros((cout,), jnp.float32),
        "bns_v": jnp.ones((cout,), jnp.float32),
    }


if __name__ == "__main__":
    key = jax.random.PRNGKey(0)
    kx1, kp1, kx2, kp2 = jax.random.split(key, 4)

    # bf16 MXU inputs / bf16 activations in HBM -> tolerance relaxed vs f32 ref.
    ATOL = RTOL = 5e-2

    # Case 1: projection shortcut (stride 2, channel change).
    N, CIN, COUT, H, W, STRIDE = 2, 4, 8, 16, 16, 2
    x = jax.random.normal(kx1, (N, CIN, H, W), jnp.float32)
    params = init_params(kp1, CIN, COUT)
    out = jax.block_until_ready(residual_block_forward(x, params, STRIDE))
    ref = jax.block_until_ready(residual_block_reference(x, params, STRIDE))
    assert out.shape == ref.shape, (out.shape, ref.shape)
    assert jnp.allclose(out, ref, atol=ATOL, rtol=RTOL), float(
        jnp.max(jnp.abs(out - ref)))

    # Case 2: identity shortcut (stride 1, same channels).
    x2 = jax.random.normal(kx2, (N, COUT, 8, 8), jnp.float32)
    params2 = init_params(kp2, COUT, COUT)
    out2 = jax.block_until_ready(residual_block_forward(x2, params2, 1))
    ref2 = jax.block_until_ready(residual_block_reference(x2, params2, 1))
    assert out2.shape == ref2.shape, (out2.shape, ref2.shape)
    assert jnp.allclose(out2, ref2, atol=ATOL, rtol=RTOL), float(
        jnp.max(jnp.abs(out2 - ref2)))

    print("KERNEL_OK")
</pallas_src>

<mosaic_0001>
module attributes {stable_mosaic.version = 11 : i64} {
  func.func @_residual_block_kernel(%arg0: i32, %arg1: memref<1x36x9x128xbf16, #tpu.memory_space<vmem>>, %arg2: memref<1152x128xbf16, #tpu.memory_space<vmem>>, %arg3: memref<1152x128xbf16, #tpu.memory_space<vmem>>, %arg4: memref<1x128xf32, #tpu.memory_space<vmem>>, %arg5: memref<1x128xf32, #tpu.memory_space<vmem>>, %arg6: memref<128x128xbf16, #tpu.memory_space<vmem>>, %arg7: memref<1x128xf32, #tpu.memory_space<vmem>>, %arg8: memref<1x8x8x128xbf16, #tpu.memory_space<vmem>>) attributes {dimension_semantics = [#tpu.dimension_semantics<parallel>], iteration_bounds = array<i64: 2>, scalar_prefetch = 0 : i64, scratch_operands = 0 : i64, tpu.core_type = #tpu.core_type<tc>, window_params = [{transform_indices = @transform_0, window_bounds = array<i64: 1, 36, 9, 128>}, {pipeline_mode = #tpu.pipeline_mode<synchronous>, transform_indices = @transform_1, window_bounds = array<i64: 1152, 128>}, {pipeline_mode = #tpu.pipeline_mode<synchronous>, transform_indices = @transform_2, window_bounds = array<i64: 1152, 128>}, {pipeline_mode = #tpu.pipeline_mode<synchronous>, transform_indices = @transform_3, window_bounds = array<i64: 1, 128>}, {pipeline_mode = #tpu.pipeline_mode<synchronous>, transform_indices = @transform_4, window_bounds = array<i64: 1, 128>}, {pipeline_mode = #tpu.pipeline_mode<synchronous>, transform_indices = @transform_5, window_bounds = array<i64: 128, 128>}, {pipeline_mode = #tpu.pipeline_mode<synchronous>, transform_indices = @transform_6, window_bounds = array<i64: 1, 128>}, {transform_indices = @transform_7, window_bounds = array<i64: 1, 8, 8, 128>}]} {
    %c0 = arith.constant 0 : index
    %c0_0 = arith.constant 0 : index
    %c0_1 = arith.constant 0 : index
    %c0_2 = arith.constant 0 : index
    %0 = vector.load %arg1[%c0, %c0_0, %c0_1, %c0_2] : memref<1x36x9x128xbf16, #tpu.memory_space<vmem>>, vector<1x8x8x128xbf16>
    %1 = vector.shape_cast %0 : vector<1x8x8x128xbf16> to vector<8x8x128xbf16>
    %c0_3 = arith.constant 0 : index
    %c9 = arith.constant 9 : index
    %c0_4 = arith.constant 0 : index
    %c0_5 = arith.constant 0 : index
    %2 = vector.load %arg1[%c0_3, %c9, %c0_4, %c0_5] : memref<1x36x9x128xbf16, #tpu.memory_space<vmem>>, vector<1x8x8x128xbf16>
    %3 = vector.shape_cast %2 : vector<1x8x8x128xbf16> to vector<8x8x128xbf16>
    %c0_6 = arith.constant 0 : index
    %c0_7 = arith.constant 0 : index
    %c1 = arith.constant 1 : index
    %c0_8 = arith.constant 0 : index
    %4 = vector.load %arg1[%c0_6, %c0_7, %c1, %c0_8] : memref<1x36x9x128xbf16, #tpu.memory_space<vmem>>, vector<1x8x8x128xbf16>
    %5 = vector.shape_cast %4 : vector<1x8x8x128xbf16> to vector<8x8x128xbf16>
    %c0_9 = arith.constant 0 : index
    %c18 = arith.constant 18 : index
    %c0_10 = arith.constant 0 : index
    %c0_11 = arith.constant 0 : index
    %6 = vector.load %arg1[%c0_9, %c18, %c0_10, %c0_11] : memref<1x36x9x128xbf16, #tpu.memory_space<vmem>>, vector<1x8x8x128xbf16>
    %7 = vector.shape_cast %6 : vector<1x8x8x128xbf16> to vector<8x8x128xbf16>
    %c0_12 = arith.constant 0 : index
    %c27 = arith.constant 27 : index
    %c0_13 = arith.constant 0 : index
    %c0_14 = arith.constant 0 : index
    %8 = vector.load %arg1[%c0_12, %c27, %c0_13, %c0_14] : memref<1x36x9x128xbf16, #tpu.memory_space<vmem>>, vector<1x8x8x128xbf16>
    %9 = vector.shape_cast %8 : vector<1x8x8x128xbf16> to vector<8x8x128xbf16>
    %c0_15 = arith.constant 0 : index
    %c18_16 = arith.constant 18 : index
    %c1_17 = arith.constant 1 : index
    %c0_18 = arith.constant 0 : index
    %10 = vector.load %arg1[%c0_15, %c18_16, %c1_17, %c0_18] : memref<1x36x9x128xbf16, #tpu.memory_space<vmem>>, vector<1x8x8x128xbf16>
    %11 = vector.shape_cast %10 : vector<1x8x8x128xbf16> to vector<8x8x128xbf16>
    %c0_19 = arith.constant 0 : index
    %c1_20 = arith.constant 1 : index
    %c0_21 = arith.constant 0 : index
    %c0_22 = arith.constant 0 : index
    %12 = vector.load %arg1[%c0_19, %c1_20, %c0_21, %c0_22] : memref<1x36x9x128xbf16, #tpu.memory_space<vmem>>, vector<1x8x8x128xbf16>
    %13 = vector.shape_cast %12 : vector<1x8x8x128xbf16> to vector<8x8x128xbf16>
    %c0_23 = arith.constant 0 : index
    %c10 = arith.constant 10 : index
    %c0_24 = arith.constant 0 : index
    %c0_25 = arith.constant 0 : index
    %14 = vector.load %arg1[%c0_23, %c10, %c0_24, %c0_25] : memref<1x36x9x128xbf16, #tpu.memory_space<vmem>>, vector<1x8x8x128xbf16>
    %15 = vector.shape_cast %14 : vector<1x8x8x128xbf16> to vector<8x8x128xbf16>
    %c0_26 = arith.constant 0 : index
    %c1_27 = arith.constant 1 : index
    %c1_28 = arith.constant 1 : index
    %c0_29 = arith.constant 0 : index
    %16 = vector.load %arg1[%c0_26, %c1_27, %c1_28, %c0_29] : memref<1x36x9x128xbf16, #tpu.memory_space<vmem>>, vector<1x8x8x128xbf16>
    %17 = vector.shape_cast %16 : vector<1x8x8x128xbf16> to vector<8x8x128xbf16>
    %18 = tpu.concatenate %1, %3, %5, %7, %9, %11, %13, %15, %17 in 2 : vector<8x8x128xbf16>, vector<8x8x128xbf16>, vector<8x8x128xbf16>, vector<8x8x128xbf16>, vector<8x8x128xbf16>, vector<8x8x128xbf16>, vector<8x8x128xbf16>, vector<8x8x128xbf16>, vector<8x8x128xbf16> -> vector<8x8x1152xbf16>
    %19 = vector.shape_cast %18 : vector<8x8x1152xbf16> to vector<64x1152xbf16>
    %c0_30 = arith.constant 0 : index
    %c0_31 = arith.constant 0 : index
    %20 = vector.load %arg2[%c0_30, %c0_31] : memref<1152x128xbf16, #tpu.memory_space<vmem>>, vector<1152x128xbf16>
    %cst = arith.constant dense<0.000000e+00> : vector<64x128xf32>
    %21 = tpu.matmul %19, %20, %cst {dimension_numbers = #tpu.dot_dimension_numbers<[1], [0], [0], [1], [0, 0, 1, 1], [], []>} : vector<64x1152xbf16>, vector<1152x128xbf16>, vector<64x128xf32> -> vector<64x128xf32>
    %c0_32 = arith.constant 0 : index
    %c0_33 = arith.constant 0 : index
    %22 = vector.load %arg4[%c0_32, %c0_33] : memref<1x128xf32, #tpu.memory_space<vmem>>, vector<1x128xf32>
    %23 = vector.broadcast %22 : vector<1x128xf32> to vector<64x128xf32>
    %24 = arith.addf %21, %23 : vector<64x128xf32>
    %cst_34 = arith.constant 0.000000e+00 : f32
    %25 = vector.broadcast %cst_34 : f32 to vector<64x128xf32>
    %26 = arith.maximumf %24, %25 : vector<64x128xf32>
    %27 = vector.shape_cast %9 : vector<8x8x128xbf16> to vector<64x128xbf16>
    %c0_35 = arith.constant 0 : index
    %c0_36 = arith.constant 0 : index
    %28 = vector.load %arg6[%c0_35, %c0_36] : memref<128x128xbf16, #tpu.memory_space<vmem>>, vector<128x128xbf16>
    %cst_37 = arith.constant dense<0.000000e+00> : vector<64x128xf32>
    %29 = tpu.matmul %27, %28, %cst_37 {dimension_numbers = #tpu.dot_dimension_numbers<[1], [0], [0], [1], [0, 0, 1, 1], [], []>} : vector<64x128xbf16>, vector<128x128xbf16>, vector<64x128xf32> -> vector<64x128xf32>
    %c0_38 = arith.constant 0 : index
    %c0_39 = arith.constant 0 : index
    %30 = vector.load %arg7[%c0_38, %c0_39] : memref<1x128xf32, #tpu.memory_space<vmem>>, vector<1x128xf32>
    %31 = vector.broadcast %30 : vector<1x128xf32> to vector<64x128xf32>
    %32 = arith.addf %29, %31 : vector<64x128xf32>
    %33 = arith.truncf %26 : vector<64x128xf32> to vector<64x128xbf16>
    %34 = vector.shape_cast %33 : vector<64x128xbf16> to vector<8x8x128xbf16>
    %cst_40 = arith.constant 0.000000e+00 : bf16
    %35 = vector.broadcast %cst_40 : bf16 to vector<1x8x128xbf16>
    %36 = vector.extract_strided_slice %34 {offsets = [0, 0, 0], sizes = [7, 8, 128], strides = [1, 1, 1]} : vector<8x8x128xbf16> to vector<7x8x128xbf16>
    %37 = tpu.concatenate %35, %36 in 0 : vector<1x8x128xbf16>, vector<7x8x128xbf16> -> vector<8x8x128xbf16>
    %cst_41 = arith.constant 0.000000e+00 : bf16
    %38 = vector.broadcast %cst_41 : bf16 to vector<8x1x128xbf16>
    %39 = vector.extract_strided_slice %37 {offsets = [0, 0, 0], sizes = [8, 7, 128], strides = [1, 1, 1]} : vector<8x8x128xbf16> to vector<8x7x128xbf16>
    %40 = tpu.concatenate %38, %39 in 1 : vector<8x1x128xbf16>, vector<8x7x128xbf16> -> vector<8x8x128xbf16>
    %cst_42 = arith.constant 0.000000e+00 : bf16
    %41 = vector.broadcast %cst_42 : bf16 to vector<1x8x128xbf16>
    %42 = vector.extract_strided_slice %34 {offsets = [0, 0, 0], sizes = [7, 8, 128], strides = [1, 1, 1]} : vector<8x8x128xbf16> to vector<7x8x128xbf16>
    %43 = tpu.concatenate %41, %42 in 0 : vector<1x8x128xbf16>, vector<7x8x128xbf16> -> vector<8x8x128xbf16>
    %cst_43 = arith.constant 0.000000e+00 : bf16
    %44 = vector.broadcast %cst_43 : bf16 to vector<1x8x128xbf16>
    %45 = vector.extract_strided_slice %34 {offsets = [0, 0, 0], sizes = [7, 8, 128], strides = [1, 1, 1]} : vector<8x8x128xbf16> to vector<7x8x128xbf16>
    %46 = tpu.concatenate %44, %45 in 0 : vector<1x8x128xbf16>, vector<7x8x128xbf16> -> vector<8x8x128xbf16>
    %47 = vector.extract_strided_slice %46 {offsets = [0, 1, 0], sizes = [8, 7, 128], strides = [1, 1, 1]} : vector<8x8x128xbf16> to vector<8x7x128xbf16>
    %cst_44 = arith.constant 0.000000e+00 : bf16
    %48 = vector.broadcast %cst_44 : bf16 to vector<8x1x128xbf16>
    %49 = tpu.concatenate %47, %48 in 1 : vector<8x7x128xbf16>, vector<8x1x128xbf16> -> vector<8x8x128xbf16>
    %cst_45 = arith.constant 0.000000e+00 : bf16
    %50 = vector.broadcast %cst_45 : bf16 to vector<8x1x128xbf16>
    %51 = vector.extract_strided_slice %34 {offsets = [0, 0, 0], sizes = [8, 7, 128], strides = [1, 1, 1]} : vector<8x8x128xbf16> to vector<8x7x128xbf16>
    %52 = tpu.concatenate %50, %51 in 1 : vector<8x1x128xbf16>, vector<8x7x128xbf16> -> vector<8x8x128xbf16>
    %53 = vector.extract_strided_slice %34 {offsets = [0, 1, 0], sizes = [8, 7, 128], strides = [1, 1, 1]} : vector<8x8x128xbf16> to vector<8x7x128xbf16>
    %cst_46 = arith.constant 0.000000e+00 : bf16
    %54 = vector.broadcast %cst_46 : bf16 to vector<8x1x128xbf16>
    %55 = tpu.concatenate %53, %54 in 1 : vector<8x7x128xbf16>, vector<8x1x128xbf16> -> vector<8x8x128xbf16>
    %56 = vector.extract_strided_slice %34 {offsets = [1, 0, 0], sizes = [7, 8, 128], strides = [1, 1, 1]} : vector<8x8x128xbf16> to vector<7x8x128xbf16>
    %cst_47 = arith.constant 0.000000e+00 : bf16
    %57 = vector.broadcast %cst_47 : bf16 to vector<1x8x128xbf16>
    %58 = tpu.concatenate %56, %57 in 0 : vector<7x8x128xbf16>, vector<1x8x128xbf16> -> vector<8x8x128xbf16>
    %cst_48 = arith.constant 0.000000e+00 : bf16
    %59 = vector.broadcast %cst_48 : bf16 to vector<8x1x128xbf16>
    %60 = vector.extract_strided_slice %58 {offsets = [0, 0, 0], sizes = [8, 7, 128], strides = [1, 1, 1]} : vector<8x8x128xbf16> to vector<8x7x128xbf16>
    %61 = tpu.concatenate %59, %60 in 1 : vector<8x1x128xbf16>, vector<8x7x128xbf16> -> vector<8x8x128xbf16>
    %62 = vector.extract_strided_slice %34 {offsets = [1, 0, 0], sizes = [7, 8, 128], strides = [1, 1, 1]} : vector<8x8x128xbf16> to vector<7x8x128xbf16>
    %cst_49 = arith.constant 0.000000e+00 : bf16
    %63 = vector.broadcast %cst_49 : bf16 to vector<1x8x128xbf16>
    %64 = tpu.concatenate %62, %63 in 0 : vector<7x8x128xbf16>, vector<1x8x128xbf16> -> vector<8x8x128xbf16>
    %65 = vector.extract_strided_slice %34 {offsets = [1, 0, 0], sizes = [7, 8, 128], strides = [1, 1, 1]} : vector<8x8x128xbf16> to vector<7x8x128xbf16>
    %cst_50 = arith.constant 0.000000e+00 : bf16
    %66 = vector.broadcast %cst_50 : bf16 to vector<1x8x128xbf16>
    %67 = tpu.concatenate %65, %66 in 0 : vector<7x8x128xbf16>, vector<1x8x128xbf16> -> vector<8x8x128xbf16>
    %68 = vector.extract_strided_slice %67 {offsets = [0, 1, 0], sizes = [8, 7, 128], strides = [1, 1, 1]} : vector<8x8x128xbf16> to vector<8x7x128xbf16>
    %cst_51 = arith.constant 0.000000e+00 : bf16
    %69 = vector.broadcast %cst_51 : bf16 to vector<8x1x128xbf16>
    %70 = tpu.concatenate %68, %69 in 1 : vector<8x7x128xbf16>, vector<8x1x128xbf16> -> vector<8x8x128xbf16>
    %71 = tpu.concatenate %40, %43, %49, %52, %34, %55, %61, %64, %70 in 2 : vector<8x8x128xbf16>, vector<8x8x128xbf16>, vector<8x8x128xbf16>, vector<8x8x128xbf16>, vector<8x8x128xbf16>, vector<8x8x128xbf16>, vector<8x8x128xbf16>, vector<8x8x128xbf16>, vector<8x8x128xbf16> -> vector<8x8x1152xbf16>
    %72 = vector.shape_cast %71 : vector<8x8x1152xbf16> to vector<64x1152xbf16>
    %c0_52 = arith.constant 0 : index
    %c0_53 = arith.constant 0 : index
    %73 = vector.load %arg3[%c0_52, %c0_53] : memref<1152x128xbf16, #tpu.memory_space<vmem>>, vector<1152x128xbf16>
    %cst_54 = arith.constant dense<0.000000e+00> : vector<64x128xf32>
    %74 = tpu.matmul %72, %73, %cst_54 {dimension_numbers = #tpu.dot_dimension_numbers<[1], [0], [0], [1], [0, 0, 1, 1], [], []>} : vector<64x1152xbf16>, vector<1152x128xbf16>, vector<64x128xf32> -> vector<64x128xf32>
    %c0_55 = arith.constant 0 : index
    %c0_56 = arith.constant 0 : index
    %75 = vector.load %arg5[%c0_55, %c0_56] : memref<1x128xf32, #tpu.memory_space<vmem>>, vector<1x128xf32>
    %76 = vector.broadcast %75 : vector<1x128xf32> to vector<64x128xf32>
    %77 = arith.addf %74, %76 : vector<64x128xf32>
    %78 = arith.addf %77, %32 : vector<64x128xf32>
    %cst_57 = arith.constant 0.000000e+00 : f32
    %79 = vector.broadcast %cst_57 : f32 to vector<64x128xf32>
    %80 = arith.maximumf %78, %79 : vector<64x128xf32>
    %81 = vector.shape_cast %80 : vector<64x128xf32> to vector<1x8x8x128xf32>
    %82 = arith.truncf %81 : vector<1x8x8x128xf32> to vector<1x8x8x128xbf16>
    %c0_58 = arith.constant 0 : index
    %c0_59 = arith.constant 0 : index
    %c0_60 = arith.constant 0 : index
    %c0_61 = arith.constant 0 : index
    %83 = vector.load %arg8[%c0_58, %c0_59, %c0_60, %c0_61] : memref<1x8x8x128xbf16, #tpu.memory_space<vmem>>, vector<1x8x8x128xbf16>
    tpu.vector_store %arg8[%c0_58, %c0_59, %c0_60, %c0_61], %82 {strides = array<i32>} : memref<1x8x8x128xbf16, #tpu.memory_space<vmem>>, vector<1x8x8x128xbf16>,
    return
  }
  func.func @transform_0(%arg0: i32) -> (i32, i32, i32, i32) {
    %c0_i32 = arith.constant 0 : i32
    %c0_i32_0 = arith.constant 0 : i32
    %c0_i32_1 = arith.constant 0 : i32
    %c0_i32_2 = arith.constant 0 : i32
    return %arg0, %c0_i32, %c0_i32_0, %c0_i32_1 : i32, i32, i32, i32
  }
  func.func @transform_1(%arg0: i32) -> (i32, i32) {
    %c0_i32 = arith.constant 0 : i32
    %c0_i32_0 = arith.constant 0 : i32
    %c0_i32_1 = arith.constant 0 : i32
    return %c0_i32, %c0_i32_0 : i32, i32
  }
  func.func @transform_2(%arg0: i32) -> (i32, i32) {
    %c0_i32 = arith.constant 0 : i32
    %c0_i32_0 = arith.constant 0 : i32
    %c0_i32_1 = arith.constant 0 : i32
    return %c0_i32, %c0_i32_0 : i32, i32
  }
  func.func @transform_3(%arg0: i32) -> (i32, i32) {
    %c0_i32 = arith.constant 0 : i32
    %c0_i32_0 = arith.constant 0 : i32
    %c0_i32_1 = arith.constant 0 : i32
    return %c0_i32, %c0_i32_0 : i32, i32
  }
  func.func @transform_4(%arg0: i32) -> (i32, i32) {
    %c0_i32 = arith.constant 0 : i32
    %c0_i32_0 = arith.constant 0 : i32
    %c0_i32_1 = arith.constant 0 : i32
    return %c0_i32, %c0_i32_0 : i32, i32
  }
  func.func @transform_5(%arg0: i32) -> (i32, i32) {
    %c0_i32 = arith.constant 0 : i32
    %c0_i32_0 = arith.constant 0 : i32
    %c0_i32_1 = arith.constant 0 : i32
    return %c0_i32, %c0_i32_0 : i32, i32
  }
  func.func @transform_6(%arg0: i32) -> (i32, i32) {
    %c0_i32 = arith.constant 0 : i32
    %c0_i32_0 = arith.constant 0 : i32
    %c0_i32_1 = arith.constant 0 : i32
    return %c0_i32, %c0_i32_0 : i32, i32
  }
  func.func @transform_7(%arg0: i32) -> (i32, i32, i32, i32) {
    %c0_i32 = arith.constant 0 : i32
    %c0_i32_0 = arith.constant 0 : i32
    %c0_i32_1 = arith.constant 0 : i32
    %c0_i32_2 = arith.constant 0 : i32
    return %arg0, %c0_i32, %c0_i32_0, %c0_i32_1 : i32, i32, i32, i32
  }
}

</mosaic_0001>

<llo_original>
// kernel: residual_block_forward.1
$region0: #{residual_block_forward.1}
  #allocation0 [shape = 'u32[]', space=smem, size = 0x4, offset = 0x4, fixed_abs, tag = 'smem constant byte address 0x4 - core index']
  #allocation1 [shape = 'u32[144,128]{1,0:T(1,128)}', space=vmem, size = 0x12000, scoped, tag = 'internal scratch']
  %s0 = inlined_call_operand.vmem [shape: bf16[2,36,9,128], index: 0, kind: input, shape index: {}]
  %s1 = inlined_call_operand.vmem [shape: bf16[1152,128], index: 1, kind: input, shape index: {}]
  %s2 = inlined_call_operand.vmem [shape: bf16[1152,128], index: 2, kind: input, shape index: {}]
  %s3 = inlined_call_operand.vmem [shape: f32[1,128], index: 3, kind: input, shape index: {}]
  %s4 = inlined_call_operand.vmem [shape: f32[1,128], index: 4, kind: input, shape index: {}]
  %s5 = inlined_call_operand.vmem [shape: bf16[128,128], index: 5, kind: input, shape index: {}]
  %s6 = inlined_call_operand.vmem [shape: f32[1,128], index: 6, kind: input, shape index: {}]
  %s7 = inlined_call_operand.vmem [shape: bf16[2,8,8,128], index: 7, kind: output, shape index: {}]
  %s8 = sld [smem:[#allocation0]]
  $region61: #{residual_block_forward.1} parent=0
    _
  %s10 = ssub.s32 1, %s8
  %s11 = scalar_select 0, %s10, %s8
  loop: start=0, step=1, limit=4
  $region2: #{residual_block_forward.1} parent=0 // loop_pre_header
    _
  $region3: #{residual_block_forward.1} parent=0 // loop_header
    %s13 = sphi 0, %s17
    %p14 = scmp.ge.s32.totalorder %s13, 4
    %s23 = sphi 0, %s25
    %s26 = sphi 0, %s23
    %s27 = sphi 0, %s26
    %s43 = sphi 0, %s27
    %s47 = sphi 0, %s47
    %s49 = sphi 0, %s47
    %s50 = sphi 0, %s49
    %s64 = sphi 0, %s50
    %s68 = sphi 0, %s68
    %s70 = sphi 0, %s68
    %s71 = sphi 0, %s70
    %s85 = sphi 0, %s71
    %s89 = sphi 0, %s89
    %s91 = sphi 0, %s89
    %s92 = sphi 0, %s91
    %s106 = sphi 0, %s92
    %s110 = sphi 0, %s110
    %s112 = sphi 0, %s110
    %s113 = sphi 0, %s112
    %s127 = sphi 0, %s113
    %s131 = sphi 0, %s131
    %s133 = sphi 0, %s131
    %s134 = sphi 0, %s133
    %s148 = sphi 0, %s134
    %s152 = sphi 0, %s152
    %s154 = sphi 0, %s152
    %s155 = sphi 0, %s154
    %s169 = sphi 0, %s155
    %s175 = sphi 0, %s177
    %s178 = sphi 0, %s175
    %s179 = sphi 0, %s178
    %s195 = sphi 0, %s179
  $region4: #{residual_block_forward.1} parent=0 // loop_header_branch
    %16 = sbr.rel (%p14) target = $region8
  $region5: #{residual_block_forward.1} parent=0 // loop_body
    %s18 = ssub.s32 %s13, 1
    %s19 = ssub.s32 %s13, 2
    %s20 = sadd.s32 %s13, 1
    %s21 = ssub.s32 %s13, %s20
    %p22 = scmp.eq.s32.totalorder %s21, 0
    %s24 = sadd.s32 %s23, 1
    %s25 = scalar_select %p22, %s23, %s24
    %p28 = pneg %p22
    %p29 = scmp.eq.s32.totalorder %s13, 1
    %p30 = por %p28, %p29
    %p31 = scmp.ne.s32.totalorder %s23, %s26
    %p32 = scmp.eq.s32.totalorder %s13, 0
    %p33 = por %p31, %p32
    %p34 = scmp.ne.s32.totalorder %s23, %s26
    %p35 = scmp.eq.s32.totalorder %s18, 1
    %p36 = por %p34, %p35
    %p37 = scmp.ne.s32.totalorder %s26, %s27
    %p38 = scmp.eq.s32.totalorder %s18, 0
    %p39 = por %p37, %p38
    %p40 = scmp.ne.s32.totalorder %s26, %s27
    %p41 = scmp.eq.s32.totalorder %s19, 1
    %p42 = por %p40, %p41
    %p44 = scmp.ne.s32.totalorder %s27, %s43
    %p45 = scmp.eq.s32.totalorder %s19, 0
    %p46 = por %p44, %p45
    %s48 = sadd.s32 %s47, 1
    %p51 = scmp.eq.s32.totalorder %s13, 1
    %p52 = scmp.ne.s32.totalorder %s47, %s49
    %p53 = scmp.eq.s32.totalorder %s13, 0
    %p54 = por %p52, %p53
    %p55 = scmp.ne.s32.totalorder %s47, %s49
    %p56 = scmp.eq.s32.totalorder %s18, 1
    %p57 = por %p55, %p56
    %p58 = scmp.ne.s32.totalorder %s49, %s50
    %p59 = scmp.eq.s32.totalorder %s18, 0
    %p60 = por %p58, %p59
    %p61 = scmp.ne.s32.totalorder %s49, %s50
    %p62 = scmp.eq.s32.totalorder %s19, 1
    %p63 = por %p61, %p62
    %p65 = scmp.ne.s32.totalorder %s50, %s64
    %p66 = scmp.eq.s32.totalorder %s19, 0
    %p67 = por %p65, %p66
    %s69 = sadd.s32 %s68, 1
    %p72 = scmp.eq.s32.totalorder %s13, 1
    %p73 = scmp.ne.s32.totalorder %s68, %s70
    %p74 = scmp.eq.s32.totalorder %s13, 0
    %p75 = por %p73, %p74
    %p76 = scmp.ne.s32.totalorder %s68, %s70
    %p77 = scmp.eq.s32.totalorder %s18, 1
    %p78 = por %p76, %p77
    %p79 = scmp.ne.s32.totalorder %s70, %s71
    %p80 = scmp.eq.s32.totalorder %s18, 0
    %p81 = por %p79, %p80
    %p82 = scmp.ne.s32.totalorder %s70, %s71
    %p83 = scmp.eq.s32.totalorder %s19, 1
    %p84 = por %p82, %p83
    %p86 = scmp.ne.s32.totalorder %s71, %s85
    %p87 = scmp.eq.s32.totalorder %s19, 0
    %p88 = por %p86, %p87
    %s90 = sadd.s32 %s89, 1
    %p93 = scmp.eq.s32.totalorder %s13, 1
    %p94 = scmp.ne.s32.totalorder %s89, %s91
    %p95 = scmp.eq.s32.totalorder %s13, 0
    %p96 = por %p94, %p95
    %p97 = scmp.ne.s32.totalorder %s89, %s91
    %p98 = scmp.eq.s32.totalorder %s18, 1
    %p99 = por %p97, %p98
    %p100 = scmp.ne.s32.totalorder %s91, %s92
    %p101 = scmp.eq.s32.totalorder %s18, 0
    %p102 = por %p100, %p101
    %p103 = scmp.ne.s32.totalorder %s91, %s92
    %p104 = scmp.eq.s32.totalorder %s19, 1
    %p105 = por %p103, %p104
    %p107 = scmp.ne.s32.totalorder %s92, %s106
    %p108 = scmp.eq.s32.totalorder %s19, 0
    %p109 = por %p107, %p108
    %s111 = sadd.s32 %s110, 1
    %p114 = scmp.eq.s32.totalorder %s13, 1
    %p115 = scmp.ne.s32.totalorder %s110, %s112
    %p116 = scmp.eq.s32.totalorder %s13, 0
    %p117 = por %p115, %p116
    %p118 = scmp.ne.s32.totalorder %s110, %s112
    %p119 = scmp.eq.s32.totalorder %s18, 1
    %p120 = por %p118, %p119
    %p121 = scmp.ne.s32.totalorder %s112, %s113
    %p122 = scmp.eq.s32.totalorder %s18, 0
    %p123 = por %p121, %p122
    %p124 = scmp.ne.s32.totalorder %s112, %s113
    %p125 = scmp.eq.s32.totalorder %s19, 1
    %p126 = por %p124, %p125
    %p128 = scmp.ne.s32.totalorder %s113, %s127
    %p129 = scmp.eq.s32.totalorder %s19, 0
    %p130 = por %p128, %p129
    %s132 = sadd.s32 %s131, 1
    %p135 = scmp.eq.s32.totalorder %s13, 1
    %p136 = scmp.ne.s32.totalorder %s131, %s133
    %p137 = scmp.eq.s32.totalorder %s13, 0
    %p138 = por %p136, %p137
    %p139 = scmp.ne.s32.totalorder %s131, %s133
    %p140 = scmp.eq.s32.totalorder %s18, 1
    %p141 = por %p139, %p140
    %p142 = scmp.ne.s32.totalorder %s133, %s134
    %p143 = scmp.eq.s32.totalorder %s18, 0
    %p144 = por %p142, %p143
    %p145 = scmp.ne.s32.totalorder %s133, %s134
    %p146 = scmp.eq.s32.totalorder %s19, 1
    %p147 = por %p145, %p146
    %p149 = scmp.ne.s32.totalorder %s134, %s148
    %p150 = scmp.eq.s32.totalorder %s19, 0
    %p151 = por %p149, %p150
    %s153 = sadd.s32 %s152, 1
    %p156 = scmp.eq.s32.totalorder %s13, 1
    %p157 = scmp.ne.s32.totalorder %s152, %s154
    %p158 = scmp.eq.s32.totalorder %s13, 0
    %p159 = por %p157, %p158
    %p160 = scmp.ne.s32.totalorder %s152, %s154
    %p161 = scmp.eq.s32.totalorder %s18, 1
    %p162 = por %p160, %p161
    %p163 = scmp.ne.s32.totalorder %s154, %s155
    %p164 = scmp.eq.s32.totalorder %s18, 0
    %p165 = por %p163, %p164
    %p166 = scmp.ne.s32.totalorder %s154, %s155
    %p167 = scmp.eq.s32.totalorder %s19, 1
    %p168 = por %p166, %p167
    %p170 = scmp.ne.s32.totalorder %s155, %s169
    %p171 = scmp.eq.s32.totalorder %s19, 0
    %p172 = por %p170, %p171
    %s173 = ssub.s32 %s13, %s20
    %p174 = scmp.eq.s32.totalorder %s173, 0
    %s176 = sadd.s32 %s175, 1
    %s177 = scalar_select %p174, %s175, %s176
    %p180 = pneg %p174
    %p181 = scmp.eq.s32.totalorder %s13, 1
    %p182 = por %p180, %p181
    %p183 = scmp.ne.s32.totalorder %s175, %s178
    %p184 = scmp.eq.s32.totalorder %s13, 0
    %p185 = por %p183, %p184
    %p186 = scmp.ne.s32.totalorder %s175, %s178
    %p187 = scmp.eq.s32.totalorder %s18, 1
    %p188 = por %p186, %p187
    %p189 = scmp.ne.s32.totalorder %s178, %s179
    %p190 = scmp.eq.s32.totalorder %s18, 0
    %p191 = por %p189, %p190
    %p192 = scmp.ne.s32.totalorder %s178, %s179
    %p193 = scmp.eq.s32.totalorder %s19, 1
    %p194 = por %p192, %p193
    %p196 = scmp.ne.s32.totalorder %s179, %s195
    %p197 = scmp.eq.s32.totalorder %s19, 0
    %p198 = por %p196, %p197
    %p199 = scmp.le.s32.totalorder 1, %s13
    %p200 = scmp.lt.s32.totalorder %s13, 3
    %p201 = pnand %p199, %p200
    %p202 = pneg %p201
    // Predicated region
    $region9: #{residual_block_forward.1} parent=5 // pred_check
      _
    $region10: #{residual_block_forward.1} parent=5 // pred_check_branch
      %204 = sbr.rel (%p201) target = $region12
    $region11: #{residual_block_forward.1} parent=5 // pred_region
      %s205 = ssub.s32 %s13, 1
      // Predicated region
      $region13: #{residual_block_forward.1} parent=11 // pred_check
        %p206 = pneg %p60
      $region14: #{residual_block_forward.1} parent=11 // pred_check_branch
        %208 = sbr.rel (%p206) target = $region16
      $region15: #{residual_block_forward.1} parent=11 // pred_region
        _
      $region16: #{residual_block_forward.1} parent=11 // pred_fallthru
        _
      // Predicated region
      $region17: #{residual_block_forward.1} parent=11 // pred_check
        %p209 = pneg %p81
      $region18: #{residual_block_forward.1} parent=11 // pred_check_branch
        %211 = sbr.rel (%p209) target = $region20
      $region19: #{residual_block_forward.1} parent=11 // pred_region
        _
      $region20: #{residual_block_forward.1} parent=11 // pred_fallthru
        _
      // Predicated region
      $region21: #{residual_block_forward.1} parent=11 // pred_check
        %p212 = pneg %p102
      $region22: #{residual_block_forward.1} parent=11 // pred_check_branch
        %214 = sbr.rel (%p212) target = $region24
      $region23: #{residual_block_forward.1} parent=11 // pred_region
        _
      $region24: #{residual_block_forward.1} parent=11 // pred_fallthru
        _
      // Predicated region
      $region25: #{residual_block_forward.1} parent=11 // pred_check
        %p215 = pneg %p123
      $region26: #{residual_block_forward.1} parent=11 // pred_check_branch
        %217 = sbr.rel (%p215) target = $region28
      $region27: #{residual_block_forward.1} parent=11 // pred_region
        _
      $region28: #{residual_block_forward.1} parent=11 // pred_fallthru
        _
      // Predicated region
      $region29: #{residual_block_forward.1} parent=11 // pred_check
        %p218 = pneg %p144
      $region30: #{residual_block_forward.1} parent=11 // pred_check_branch
        %220 = sbr.rel (%p218) target = $region32
      $region31: #{residual_block_forward.1} parent=11 // pred_region
        _
      $region32: #{residual_block_forward.1} parent=11 // pred_fallthru
        _
      // Predicated region
      $region33: #{residual_block_forward.1} parent=11 // pred_check
        %p221 = pneg %p165
      $region34: #{residual_block_forward.1} parent=11 // pred_check_branch
        %223 = sbr.rel (%p221) target = $region36
      $region35: #{residual_block_forward.1} parent=11 // pred_region
        _
      $region36: #{residual_block_forward.1} parent=11 // pred_fallthru
        _
    $region12: #{residual_block_forward.1} parent=5 // pred_fallthru
      _
    %p224 = scmp.lt.s32.totalorder %s13, 2
    // Predicated region
    $region37: #{residual_block_forward.1} parent=5 // pred_check
      %p225 = pneg %p224
    $region38: #{residual_block_forward.1} parent=5 // pred_check_branch
      %227 = sbr.rel (%p225) target = $region40
    $region39: #{residual_block_forward.1} parent=5 // pred_region
      // Predicated region
      $region41: #{residual_block_forward.1} parent=39 // pred_check
        %p228 = pneg %p33
      $region42: #{residual_block_forward.1} parent=39 // pred_check_branch
        %230 = sbr.rel (%p228) target = $region44
      $region43: #{residual_block_forward.1} parent=39 // pred_region
        %p231 = scmp.lt.s32.totalorder %s13, 1
        %s232 = scalar_select %p231, %s13, 1
        %s233 = smul.addr %s232, 72
        %s234 = smul.addr %s233, 4
        %s235 = scalar_lea.vmem %s0, %s234
      $region44: #{residual_block_forward.1} parent=39 // pred_fallthru
        _
    $region40: #{residual_block_forward.1} parent=5 // pred_fallthru
      _
    %p236 = scmp.le.s32.totalorder 1, %s13
    %p237 = scmp.lt.s32.totalorder %s13, 3
    %p238 = pnand %p236, %p237
    %p239 = pneg %p238
    // Predicated region
    $region45: #{residual_block_forward.1} parent=5 // pred_check
      _
    $region46: #{residual_block_forward.1} parent=5 // pred_check_branch
      %241 = sbr.rel (%p238) target = $region48
    $region47: #{residual_block_forward.1} parent=5 // pred_region
      %s242 = ssub.s32 %s13, 1
      %p243 = scmp.lt.s32.totalorder %s18, 1
      %s244 = scalar_select %p243, %s18, 1
      %s245 = smul.addr %s244, 72
      %s246 = smul.addr %s245, 4
      %s247 = scalar_lea.vmem %s0, %s246
      %p248 = pneg %p39
      %p249 = pneg %p36
      %p250 = pneg %p60
      %p251 = pneg %p57
      %p252 = pneg %p81
      %p253 = pneg %p78
      %p254 = pneg %p102
      %p255 = pneg %p99
      %p256 = pneg %p123
      %p257 = pneg %p120
      %p258 = pneg %p144
      %p259 = pneg %p141
      %p260 = pneg %p165
      %p261 = pneg %p162
      %p262 = pneg %p191
      %p263 = pneg %p188
      %p264 = scmp.lt.s32.totalorder %s18, 1
      %s265 = scalar_select %p264, %s18, 1
      %s266 = smul.addr %s265, 8
      %s267 = smul.addr %s266, 4
      %s268 = scalar_lea.vmem %s7, %s267
      %p269 = scmp.lt.s32.totalorder %s18, 1
      %s270 = scalar_select %p269, %s18, 1
      %s271 = smul.addr %s270, 72
      %s272 = smul.addr %s271, 4
      %s273 = scalar_lea.vmem %s0, %s272
      %p274 = scmp.lt.s32.totalorder %s18, 1
      %s275 = scalar_select %p274, %s18, 1
      %s276 = smul.addr %s275, 8
      %s277 = smul.addr %s276, 4
      %s278 = scalar_lea.vmem %s7, %s277
      %v280 = vld [vmem:[%s273] sm:$0xf]
      %v281 = vld [vmem:[%s273 + $0x8] sm:$0xf]
      %v282 = vld [vmem:[%s273 + $0x10] sm:$0xf]
      %v283 = vld [vmem:[%s273 + $0x18] sm:$0xf]
      %v284 = vld [vmem:[%s273 + $0x20] sm:$0xf]
      %v285 = vld [vmem:[%s273 + $0x28] sm:$0xf]
      %v286 = vld [vmem:[%s273 + $0x30] sm:$0xf]
      %v287 = vld [vmem:[%s273 + $0x38] sm:$0xf]
      %s288 = scalar_lea.vmem %s273, 72
      %v289 = vld [vmem:[%s288] sm:$0xf]
      %v290 = vld [vmem:[%s288 + $0x8] sm:$0xf]
      %v291 = vld [vmem:[%s288 + $0x10] sm:$0xf]
      %v292 = vld [vmem:[%s288 + $0x18] sm:$0xf]
      %v293 = vld [vmem:[%s288 + $0x20] sm:$0xf]
      %v294 = vld [vmem:[%s288 + $0x28] sm:$0xf]
      %v295 = vld [vmem:[%s288 + $0x30] sm:$0xf]
      %v296 = vld [vmem:[%s288 + $0x38] sm:$0xf]
      %v297 = vld [vmem:[%s273 + $0x4] sm:$0x1]
      %v298 = vld [vmem:[%s273 + $0xc] sm:$0x1]
      %v299 = vld [vmem:[%s273 + $0x14] sm:$0x1]
      %v300 = vld [vmem:[%s273 + $0x1c] sm:$0x1]
      %v301 = vld [vmem:[%s273 + $0x24] sm:$0x1]
      %v302 = vld [vmem:[%s273 + $0x2c] sm:$0x1]
      %v303 = vld [vmem:[%s273 + $0x34] sm:$0x1]
      %v304 = vld [vmem:[%s273 + $0x3c] sm:$0x1]
      %s305 = scalar_lea.vmem %s273, 144
      %v306 = vld [vmem:[%s305] sm:$0xf]
      %v307 = vld [vmem:[%s305 + $0x8] sm:$0xf]
      %v308 = vld [vmem:[%s305 + $0x10] sm:$0xf]
      %v309 = vld [vmem:[%s305 + $0x18] sm:$0xf]
      %v310 = vld [vmem:[%s305 + $0x20] sm:$0xf]
      %v311 = vld [vmem:[%s305 + $0x28] sm:$0xf]
      %v312 = vld [vmem:[%s305 + $0x30] sm:$0xf]
      %v313 = vld [vmem:[%s305 + $0x38] sm:$0xf]
      %s314 = scalar_lea.vmem %s273, 216
      %v315 = vld [vmem:[%s314] sm:$0xf]
      %v316 = vld [vmem:[%s314 + $0x8] sm:$0xf]
      %v317 = vld [vmem:[%s314 + $0x10] sm:$0xf]
      %v318 = vld [vmem:[%s314 + $0x18] sm:$0xf]
      %v319 = vld [vmem:[%s314 + $0x20] sm:$0xf]
      %v320 = vld [vmem:[%s314 + $0x28] sm:$0xf]
      %v321 = vld [vmem:[%s314 + $0x30] sm:$0xf]
      %v322 = vld [vmem:[%s314 + $0x38] sm:$0xf]
      %v323 = vld [vmem:[%s305 + $0x4] sm:$0x1]
      %v324 = vld [vmem:[%s305 + $0xc] sm:$0x1]
      %v325 = vld [vmem:[%s305 + $0x14] sm:$0x1]
      %v326 = vld [vmem:[%s305 + $0x1c] sm:$0x1]
      %v327 = vld [vmem:[%s305 + $0x24] sm:$0x1]
      %v328 = vld [vmem:[%s305 + $0x2c] sm:$0x1]
      %v329 = vld [vmem:[%s305 + $0x34] sm:$0x1]
      %v330 = vld [vmem:[%s305 + $0x3c] sm:$0x1]
      %s331 = scalar_lea.vmem %s273, 8
      %v332 = vld [vmem:[%s331] sm:$0xf]
      %v333 = vld [vmem:[%s331 + $0x8] sm:$0xf]
      %v334 = vld [vmem:[%s331 + $0x10] sm:$0xf]
      %v335 = vld [vmem:[%s331 + $0x18] sm:$0xf]
      %v336 = vld [vmem:[%s331 + $0x20] sm:$0xf]
      %v337 = vld [vmem:[%s331 + $0x28] sm:$0xf]
      %v338 = vld [vmem:[%s331 + $0x30] sm:$0xf]
      %v339 = vld [vmem:[%s331 + $0x38] sm:$0xf]
      %s340 = scalar_lea.vmem %s273, 80
      %v341 = vld [vmem:[%s340] sm:$0xf]
      %v342 = vld [vmem:[%s340 + $0x8] sm:$0xf]
      %v343 = vld [vmem:[%s340 + $0x10] sm:$0xf]
      %v344 = vld [vmem:[%s340 + $0x18] sm:$0xf]
      %v345 = vld [vmem:[%s340 + $0x20] sm:$0xf]
      %v346 = vld [vmem:[%s340 + $0x28] sm:$0xf]
      %v347 = vld [vmem:[%s340 + $0x30] sm:$0xf]
      %v348 = vld [vmem:[%s340 + $0x38] sm:$0xf]
      %v349 = vld [vmem:[%s331 + $0x4] sm:$0x1]
      %v350 = vld [vmem:[%s331 + $0xc] sm:$0x1]
      %v351 = vld [vmem:[%s331 + $0x14] sm:$0x1]
      %v352 = vld [vmem:[%s331 + $0x1c] sm:$0x1]
      %v353 = vld [vmem:[%s331 + $0x24] sm:$0x1]
      %v354 = vld [vmem:[%s331 + $0x2c] sm:$0x1]
      %v355 = vld [vmem:[%s331 + $0x34] sm:$0x1]
      %v356 = vld [vmem:[%s331 + $0x3c] sm:$0x1]
      %v373 = vunpack.c.l.b16 %v280
      %v374 = vunpack.c.l.b16 %v297
      %v375 = vunpack.c.l.b16 %v281
      %v376 = vunpack.c.l.b16 %v298
      %v377 = vunpack.c.l.b16 %v282
      %v378 = vunpack.c.l.b16 %v299
      %v379 = vunpack.c.l.b16 %v283
      %v380 = vunpack.c.l.b16 %v300
      %v381 = vunpack.c.l.b16 %v284
      %v382 = vunpack.c.l.b16 %v301
      %v383 = vunpack.c.l.b16 %v285
      %v384 = vunpack.c.l.b16 %v302
      %v385 = vunpack.c.l.b16 %v286
      %v386 = vunpack.c.l.b16 %v303
      %v387 = vunpack.c.l.b16 %v287
      %v388 = vunpack.c.l.b16 %v304
      %v389 = vpack.c.b16 %v374, %v373
      %v390 = vpack.c.b16 %v376, %v375
      %v391 = vpack.c.b16 %v378, %v377
      %v392 = vpack.c.b16 %v380, %v379
      %v393 = vpack.c.b16 %v382, %v381
      %v394 = vpack.c.b16 %v384, %v383
      %v395 = vpack.c.b16 %v386, %v385
      %v396 = vpack.c.b16 %v388, %v387
      %v398 = vshrl.u32 %v389, 16
      %v400 = vshll.u32 %v389, 16
      %v402 = vrot.slane %v400, 1
      %v403 = vor.u32 %v398, %v402
      %v405 = vshrl.u32 %v390, 16
      %v407 = vshll.u32 %v390, 16
      %v409 = vrot.slane %v407, 1
      %v410 = vor.u32 %v405, %v409
      %v412 = vshrl.u32 %v391, 16
      %v414 = vshll.u32 %v391, 16
      %v416 = vrot.slane %v414, 1
      %v417 = vor.u32 %v412, %v416
      %v419 = vshrl.u32 %v392, 16
      %v421 = vshll.u32 %v392, 16
      %v423 = vrot.slane %v421, 1
      %v424 = vor.u32 %v419, %v423
      %v426 = vshrl.u32 %v393, 16
      %v428 = vshll.u32 %v393, 16
      %v430 = vrot.slane %v428, 1
      %v431 = vor.u32 %v426, %v430
      %v433 = vshrl.u32 %v394, 16
      %v435 = vshll.u32 %v394, 16
      %v437 = vrot.slane %v435, 1
      %v438 = vor.u32 %v433, %v437
      %v440 = vshrl.u32 %v395, 16
      %v442 = vshll.u32 %v395, 16
      %v444 = vrot.slane %v442, 1
      %v445 = vor.u32 %v440, %v444
      %v447 = vshrl.u32 %v396, 16
      %v449 = vshll.u32 %v396, 16
      %v451 = vrot.slane %v449, 1
      %v452 = vor.u32 %v447, %v451
      %v469 = vunpack.c.l.b16 %v306
      %v470 = vunpack.c.l.b16 %v323
      %v471 = vunpack.c.l.b16 %v307
      %v472 = vunpack.c.l.b16 %v324
      %v473 = vunpack.c.l.b16 %v308
      %v474 = vunpack.c.l.b16 %v325
      %v475 = vunpack.c.l.b16 %v309
      %v476 = vunpack.c.l.b16 %v326
      %v477 = vunpack.c.l.b16 %v310
      %v478 = vunpack.c.l.b16 %v327
      %v479 = vunpack.c.l.b16 %v311
      %v480 = vunpack.c.l.b16 %v328
      %v481 = vunpack.c.l.b16 %v312
      %v482 = vunpack.c.l.b16 %v329
      %v483 = vunpack.c.l.b16 %v313
      %v484 = vunpack.c.l.b16 %v330
      %v485 = vpack.c.b16 %v470, %v469
      %v486 = vpack.c.b16 %v472, %v471
      %v487 = vpack.c.b16 %v474, %v473
      %v488 = vpack.c.b16 %v476, %v475
      %v489 = vpack.c.b16 %v478, %v477
      %v490 = vpack.c.b16 %v480, %v479
      %v491 = vpack.c.b16 %v482, %v481
      %v492 = vpack.c.b16 %v484, %v483
      %v494 = vshrl.u32 %v485, 16
      %v496 = vshll.u32 %v485, 16
      %v498 = vrot.slane %v496, 1
      %v499 = vor.u32 %v494, %v498
      %v501 = vshrl.u32 %v486, 16
      %v503 = vshll.u32 %v486, 16
      %v505 = vrot.slane %v503, 1
      %v506 = vor.u32 %v501, %v505
      %v508 = vshrl.u32 %v487, 16
      %v510 = vshll.u32 %v487, 16
      %v512 = vrot.slane %v510, 1
      %v513 = vor.u32 %v508, %v512
      %v515 = vshrl.u32 %v488, 16
      %v517 = vshll.u32 %v488, 16
      %v519 = vrot.slane %v517, 1
      %v520 = vor.u32 %v515, %v519
      %v522 = vshrl.u32 %v489, 16
      %v524 = vshll.u32 %v489, 16
      %v526 = vrot.slane %v524, 1
      %v527 = vor.u32 %v522, %v526
      %v529 = vshrl.u32 %v490, 16
      %v531 = vshll.u32 %v490, 16
      %v533 = vrot.slane %v531, 1
      %v534 = vor.u32 %v529, %v533
      %v536 = vshrl.u32 %v491, 16
      %v538 = vshll.u32 %v491, 16
      %v540 = vrot.slane %v538, 1
      %v541 = vor.u32 %v536, %v540
      %v543 = vshrl.u32 %v492, 16
      %v545 = vshll.u32 %v492, 16
      %v547 = vrot.slane %v545, 1
      %v548 = vor.u32 %v543, %v547
      %v565 = vunpack.c.l.b16 %v332
      %v566 = vunpack.c.l.b16 %v349
      %v567 = vunpack.c.l.b16 %v333
      %v568 = vunpack.c.l.b16 %v350
      %v569 = vunpack.c.l.b16 %v334
      %v570 = vunpack.c.l.b16 %v351
      %v571 = vunpack.c.l.b16 %v335
      %v572 = vunpack.c.l.b16 %v352
      %v573 = vunpack.c.l.b16 %v336
      %v574 = vunpack.c.l.b16 %v353
      %v575 = vunpack.c.l.b16 %v337
      %v576 = vunpack.c.l.b16 %v354
      %v577 = vunpack.c.l.b16 %v338
      %v578 = vunpack.c.l.b16 %v355
      %v579 = vunpack.c.l.b16 %v339
      %v580 = vunpack.c.l.b16 %v356
      %v581 = vpack.c.b16 %v566, %v565
      %v582 = vpack.c.b16 %v568, %v567
      %v583 = vpack.c.b16 %v570, %v569
      %v584 = vpack.c.b16 %v572, %v571
      %v585 = vpack.c.b16 %v574, %v573
      %v586 = vpack.c.b16 %v576, %v575
      %v587 = vpack.c.b16 %v578, %v577
      %v588 = vpack.c.b16 %v580, %v579
      %v590 = vshrl.u32 %v581, 16
      %v592 = vshll.u32 %v581, 16
      %v594 = vrot.slane %v592, 1
      %v595 = vor.u32 %v590, %v594
      %v597 = vshrl.u32 %v582, 16
      %v599 = vshll.u32 %v582, 16
      %v601 = vrot.slane %v599, 1
      %v602 = vor.u32 %v597, %v601
      %v604 = vshrl.u32 %v583, 16
      %v606 = vshll.u32 %v583, 16
      %v608 = vrot.slane %v606, 1
      %v609 = vor.u32 %v604, %v608
      %v611 = vshrl.u32 %v584, 16
      %v613 = vshll.u32 %v584, 16
      %v615 = vrot.slane %v613, 1
      %v616 = vor.u32 %v611, %v615
      %v618 = vshrl.u32 %v585, 16
      %v620 = vshll.u32 %v585, 16
      %v622 = vrot.slane %v620, 1
      %v623 = vor.u32 %v618, %v622
      %v625 = vshrl.u32 %v586, 16
      %v627 = vshll.u32 %v586, 16
      %v629 = vrot.slane %v627, 1
      %v630 = vor.u32 %v625, %v629
      %v632 = vshrl.u32 %v587, 16
      %v634 = vshll.u32 %v587, 16
      %v636 = vrot.slane %v634, 1
      %v637 = vor.u32 %v632, %v636
      %v639 = vshrl.u32 %v588, 16
      %v641 = vshll.u32 %v588, 16
      %v643 = vrot.slane %v641, 1
      %v644 = vor.u32 %v639, %v643
      %v669 = vunpack.c.l.b16 %v289
      %v670 = vunpack.c.l.b16 %v403
      %v671 = vunpack.c.l.b16 %v315
      %v672 = vunpack.c.l.b16 %v499
      %v673 = vunpack.c.l.b16 %v341
      %v674 = vunpack.c.l.b16 %v595
      %v675 = vunpack.c.l.b16 %v290
      %v676 = vunpack.c.l.b16 %v410
      %v677 = vunpack.c.l.b16 %v316
      %v678 = vunpack.c.l.b16 %v506
      %v679 = vunpack.c.l.b16 %v342
      %v680 = vunpack.c.l.b16 %v602
      %v681 = vunpack.c.l.b16 %v291
      %v682 = vunpack.c.l.b16 %v417
      %v683 = vunpack.c.l.b16 %v317
      %v684 = vunpack.c.l.b16 %v513
      %v685 = vunpack.c.l.b16 %v343
      %v686 = vunpack.c.l.b16 %v609
      %v687 = vunpack.c.l.b16 %v292
      %v688 = vunpack.c.l.b16 %v424
      %v689 = vunpack.c.l.b16 %v318
      %v690 = vunpack.c.l.b16 %v520
      %v691 = vunpack.c.l.b16 %v344
      %v692 = vunpack.c.l.b16 %v616
      %v693 = vunpack.c.l.b16 %v293
      %v694 = vunpack.c.l.b16 %v431
      %v695 = vunpack.c.l.b16 %v319
      %v696 = vunpack.c.l.b16 %v527
      %v697 = vunpack.c.l.b16 %v345
      %v698 = vunpack.c.l.b16 %v623
      %v699 = vunpack.c.l.b16 %v294
      %v700 = vunpack.c.l.b16 %v438
      %v701 = vunpack.c.l.b16 %v320
      %v702 = vunpack.c.l.b16 %v534
      %v703 = vunpack.c.l.b16 %v346
      %v704 = vunpack.c.l.b16 %v630
      %v705 = vunpack.c.l.b16 %v295
      %v706 = vunpack.c.l.b16 %v445
      %v707 = vunpack.c.l.b16 %v321
      %v708 = vunpack.c.l.b16 %v541
      %v709 = vunpack.c.l.b16 %v347
      %v710 = vunpack.c.l.b16 %v637
      %v711 = vunpack.c.l.b16 %v296
      %v712 = vunpack.c.l.b16 %v452
      %v713 = vunpack.c.l.b16 %v322
      %v714 = vunpack.c.l.b16 %v548
      %v715 = vunpack.c.l.b16 %v348
      %v716 = vunpack.c.l.b16 %v644
      %v717 = vld [vmem:[%s1] sm:$0xf]
      %v718 = vld [vmem:[%s1 + $0x4] sm:$0xf]
      %v719 = vld [vmem:[%s1 + $0x8] sm:$0xf]
      %v720 = vld [vmem:[%s1 + $0xc] sm:$0xf]
      %v721 = vld [vmem:[%s1 + $0x10] sm:$0xf]
      %v722 = vld [vmem:[%s1 + $0x14] sm:$0xf]
      %v723 = vld [vmem:[%s1 + $0x18] sm:$0xf]
      %v724 = vld [vmem:[%s1 + $0x1c] sm:$0xf]
      %v725 = vld [vmem:[%s1 + $0x20] sm:$0xf]
      %v726 = vld [vmem:[%s1 + $0x24] sm:$0xf]
      %v727 = vld [vmem:[%s1 + $0x28] sm:$0xf]
      %v728 = vld [vmem:[%s1 + $0x2c] sm:$0xf]
      %v729 = vld [vmem:[%s1 + $0x30] sm:$0xf]
      %v730 = vld [vmem:[%s1 + $0x34] sm:$0xf]
      %v731 = vld [vmem:[%s1 + $0x38] sm:$0xf]
      %v732 = vld [vmem:[%s1 + $0x3c] sm:$0xf]
      %v733 = vld [vmem:[%s1 + $0x40] sm:$0xf]
      %v734 = vld [vmem:[%s1 + $0x44] sm:$0xf]
      %v735 = vld [vmem:[%s1 + $0x48] sm:$0xf]
      %v736 = vld [vmem:[%s1 + $0x4c] sm:$0xf]
      %v737 = vld [vmem:[%s1 + $0x50] sm:$0xf]
      %v738 = vld [vmem:[%s1 + $0x54] sm:$0xf]
      %v739 = vld [vmem:[%s1 + $0x58] sm:$0xf]
      %v740 = vld [vmem:[%s1 + $0x5c] sm:$0xf]
      %v741 = vld [vmem:[%s1 + $0x60] sm:$0xf]
      %v742 = vld [vmem:[%s1 + $0x64] sm:$0xf]
      %v743 = vld [vmem:[%s1 + $0x68] sm:$0xf]
      %v744 = vld [vmem:[%s1 + $0x6c] sm:$0xf]
      %v745 = vld [vmem:[%s1 + $0x70] sm:$0xf]
      %v746 = vld [vmem:[%s1 + $0x74] sm:$0xf]
      %v747 = vld [vmem:[%s1 + $0x78] sm:$0xf]
      %v748 = vld [vmem:[%s1 + $0x7c] sm:$0xf]
      %v749 = vld [vmem:[%s1 + $0x80] sm:$0xf]
      %v750 = vld [vmem:[%s1 + $0x84] sm:$0xf]
      %v751 = vld [vmem:[%s1 + $0x88] sm:$0xf]
      %v752 = vld [vmem:[%s1 + $0x8c] sm:$0xf]
      %v753 = vld [vmem:[%s1 + $0x90] sm:$0xf]
      %v754 = vld [vmem:[%s1 + $0x94] sm:$0xf]
      %v755 = vld [vmem:[%s1 + $0x98] sm:$0xf]
      %v756 = vld [vmem:[%s1 + $0x9c] sm:$0xf]
      %v757 = vld [vmem:[%s1 + $0xa0] sm:$0xf]
      %v758 = vld [vmem:[%s1 + $0xa4] sm:$0xf]
      %v759 = vld [vmem:[%s1 + $0xa8] sm:$0xf]
      %v760 = vld [vmem:[%s1 + $0xac] sm:$0xf]
      %v761 = vld [vmem:[%s1 + $0xb0] sm:$0xf]
      %v762 = vld [vmem:[%s1 + $0xb4] sm:$0xf]
      %v763 = vld [vmem:[%s1 + $0xb8] sm:$0xf]
      %v764 = vld [vmem:[%s1 + $0xbc] sm:$0xf]
      %v765 = vld [vmem:[%s1 + $0xc0] sm:$0xf]
      %v766 = vld [vmem:[%s1 + $0xc4] sm:$0xf]
      %v767 = vld [vmem:[%s1 + $0xc8] sm:$0xf]
      %v768 = vld [vmem:[%s1 + $0xcc] sm:$0xf]
      %v769 = vld [vmem:[%s1 + $0xd0] sm:$0xf]
      %v770 = vld [vmem:[%s1 + $0xd4] sm:$0xf]
      %v771 = vld [vmem:[%s1 + $0xd8] sm:$0xf]
      %v772 = vld [vmem:[%s1 + $0xdc] sm:$0xf]
      %v773 = vld [vmem:[%s1 + $0xe0] sm:$0xf]
      %v774 = vld [vmem:[%s1 + $0xe4] sm:$0xf]
      %v775 = vld [vmem:[%s1 + $0xe8] sm:$0xf]
      %v776 = vld [vmem:[%s1 + $0xec] sm:$0xf]
      %v777 = vld [vmem:[%s1 + $0xf0] sm:$0xf]
      %v778 = vld [vmem:[%s1 + $0xf4] sm:$0xf]
      %v779 = vld [vmem:[%s1 + $0xf8] sm:$0xf]
      %v780 = vld [vmem:[%s1 + $0xfc] sm:$0xf]
      %v781 = vld [vmem:[%s1 + $0x100] sm:$0xf]
      %v782 = vld [vmem:[%s1 + $0x104] sm:$0xf]
      %v783 = vld [vmem:[%s1 + $0x108] sm:$0xf]
      %v784 = vld [vmem:[%s1 + $0x10c] sm:$0xf]
      %v785 = vld [vmem:[%s1 + $0x110] sm:$0xf]
      %v786 = vld [vmem:[%s1 + $0x114] sm:$0xf]
      %v787 = vld [vmem:[%s1 + $0x118] sm:$0xf]
      %v788 = vld [vmem:[%s1 + $0x11c] sm:$0xf]
      %v789 = vld [vmem:[%s1 + $0x120] sm:$0xf]
      %v790 = vld [vmem:[%s1 + $0x124] sm:$0xf]
      %v791 = vld [vmem:[%s1 + $0x128] sm:$0xf]
      %v792 = vld [vmem:[%s1 + $0x12c] sm:$0xf]
      %v793 = vld [vmem:[%s1 + $0x130] sm:$0xf]
      %v794 = vld [vmem:[%s1 + $0x134] sm:$0xf]
      %v795 = vld [vmem:[%s1 + $0x138] sm:$0xf]
      %v796 = vld [vmem:[%s1 + $0x13c] sm:$0xf]
      %v797 = vld [vmem:[%s1 + $0x140] sm:$0xf]
      %v798 = vld [vmem:[%s1 + $0x144] sm:$0xf]
      %v799 = vld [vmem:[%s1 + $0x148] sm:$0xf]
      %v800 = vld [vmem:[%s1 + $0x14c] sm:$0xf]
      %v801 = vld [vmem:[%s1 + $0x150] sm:$0xf]
      %v802 = vld [vmem:[%s1 + $0x154] sm:$0xf]
      %v803 = vld [vmem:[%s1 + $0x158] sm:$0xf]
      %v804 = vld [vmem:[%s1 + $0x15c] sm:$0xf]
      %v805 = vld [vmem:[%s1 + $0x160] sm:$0xf]
      %v806 = vld [vmem:[%s1 + $0x164] sm:$0xf]
      %v807 = vld [vmem:[%s1 + $0x168] sm:$0xf]
      %v808 = vld [vmem:[%s1 + $0x16c] sm:$0xf]
      %v809 = vld [vmem:[%s1 + $0x170] sm:$0xf]
      %v810 = vld [vmem:[%s1 + $0x174] sm:$0xf]
      %v811 = vld [vmem:[%s1 + $0x178] sm:$0xf]
      %v812 = vld [vmem:[%s1 + $0x17c] sm:$0xf]
      %v813 = vld [vmem:[%s1 + $0x180] sm:$0xf]
      %v814 = vld [vmem:[%s1 + $0x184] sm:$0xf]
      %v815 = vld [vmem:[%s1 + $0x188] sm:$0xf]
      %v816 = vld [vmem:[%s1 + $0x18c] sm:$0xf]
      %v817 = vld [vmem:[%s1 + $0x190] sm:$0xf]
      %v818 = vld [vmem:[%s1 + $0x194] sm:$0xf]
      %v819 = vld [vmem:[%s1 + $0x198] sm:$0xf]
      %v820 = vld [vmem:[%s1 + $0x19c] sm:$0xf]
      %v821 = vld [vmem:[%s1 + $0x1a0] sm:$0xf]
      %v822 = vld [vmem:[%s1 + $0x1a4] sm:$0xf]
      %v823 = vld [vmem:[%s1 + $0x1a8] sm:$0xf]
      %v824 = vld [vmem:[%s1 + $0x1ac] sm:$0xf]
      %v825 = vld [vmem:[%s1 + $0x1b0] sm:$0xf]
      %v826 = vld [vmem:[%s1 + $0x1b4] sm:$0xf]
      %v827 = vld [vmem:[%s1 + $0x1b8] sm:$0xf]
      %v828 = vld [vmem:[%s1 + $0x1bc] sm:$0xf]
      %v829 = vld [vmem:[%s1 + $0x1c0] sm:$0xf]
      %v830 = vld [vmem:[%s1 + $0x1c4] sm:$0xf]
      %v831 = vld [vmem:[%s1 + $0x1c8] sm:$0xf]
      %v832 = vld [vmem:[%s1 + $0x1cc] sm:$0xf]
      %v833 = vld [vmem:[%s1 + $0x1d0] sm:$0xf]
      %v834 = vld [vmem:[%s1 + $0x1d4] sm:$0xf]
      %v835 = vld [vmem:[%s1 + $0x1d8] sm:$0xf]
      %v836 = vld [vmem:[%s1 + $0x1dc] sm:$0xf]
      %v837 = vld [vmem:[%s1 + $0x1e0] sm:$0xf]
      %v838 = vld [vmem:[%s1 + $0x1e4] sm:$0xf]
      %v839 = vld [vmem:[%s1 + $0x1e8] sm:$0xf]
      %v840 = vld [vmem:[%s1 + $0x1ec] sm:$0xf]
      %v841 = vld [vmem:[%s1 + $0x1f0] sm:$0xf]
      %v842 = vld [vmem:[%s1 + $0x1f4] sm:$0xf]
      %v843 = vld [vmem:[%s1 + $0x1f8] sm:$0xf]
      %v844 = vld [vmem:[%s1 + $0x1fc] sm:$0xf]
      %v845 = vld [vmem:[%s1 + $0x200] sm:$0xf]
      %v846 = vld [vmem:[%s1 + $0x204] sm:$0xf]
      %v847 = vld [vmem:[%s1 + $0x208] sm:$0xf]
      %v848 = vld [vmem:[%s1 + $0x20c] sm:$0xf]
      %v849 = vld [vmem:[%s1 + $0x210] sm:$0xf]
      %v850 = vld [vmem:[%s1 + $0x214] sm:$0xf]
      %v851 = vld [vmem:[%s1 + $0x218] sm:$0xf]
      %v852 = vld [vmem:[%s1 + $0x21c] sm:$0xf]
      %v853 = vld [vmem:[%s1 + $0x220] sm:$0xf]
      %v854 = vld [vmem:[%s1 + $0x224] sm:$0xf]
      %v855 = vld [vmem:[%s1 + $0x228] sm:$0xf]
      %v856 = vld [vmem:[%s1 + $0x22c] sm:$0xf]
      %v857 = vld [vmem:[%s1 + $0x230] sm:$0xf]
      %v858 = vld [vmem:[%s1 + $0x234] sm:$0xf]
      %v859 = vld [vmem:[%s1 + $0x238] sm:$0xf]
      %v860 = vld [vmem:[%s1 + $0x23c] sm:$0xf]
      %v861 = vld [vmem:[%s3] sm:$0x1]
      %v863 = vlaneseq
      %v864 = vshrl.u32 %v863, 7
      %v865 = vsub.s32 0, %v864
      %v866 = vrot.slane %v861, %v865
      %v868 = vpack.c.b16 %v375, %v373
      %v869 = vpack.c.b16 %v675, %v669
      %v870 = vpack.c.b16 %v676, %v670
      %v871 = vpack.c.b16 %v471, %v469
      %v872 = vpack.c.b16 %v677, %v671
      %v873 = vpack.c.b16 %v678, %v672
      %v874 = vpack.c.b16 %v567, %v565
      %v875 = vpack.c.b16 %v679, %v673
      %v876 = vpack.c.b16 %v680, %v674
      %v877 = vpack.c.b16 %v379, %v377
      %v878 = vpack.c.b16 %v687, %v681
      %v879 = vpack.c.b16 %v688, %v682
      %v880 = vpack.c.b16 %v475, %v473
      %v881 = vpack.c.b16 %v689, %v683
      %v882 = vpack.c.b16 %v690, %v684
      %v883 = vpack.c.b16 %v571, %v569
      %v884 = vpack.c.b16 %v691, %v685
      %v885 = vpack.c.b16 %v692, %v686
      %v886 = vpack.c.b16 %v383, %v381
      %v887 = vpack.c.b16 %v699, %v693
      %v888 = vpack.c.b16 %v700, %v694
      %v889 = vpack.c.b16 %v479, %v477
      %v890 = vpack.c.b16 %v701, %v695
      %v891 = vpack.c.b16 %v702, %v696
      %v892 = vpack.c.b16 %v575, %v573
      %v893 = vpack.c.b16 %v703, %v697
      %v894 = vpack.c.b16 %v704, %v698
      %v895 = vpack.c.b16 %v387, %v385
      %v896 = vpack.c.b16 %v711, %v705
      %v897 = vpack.c.b16 %v712, %v706
      %v898 = vpack.c.b16 %v483, %v481
      %v899 = vpack.c.b16 %v713, %v707
      %v900 = vpack.c.b16 %v714, %v708
      %v901 = vpack.c.b16 %v579, %v577
      %v902 = vpack.c.b16 %v715, %v709
      %v903 = vpack.c.b16 %v716, %v710
      %v1084 = vunpack.c.l.b16 %v717
      %v1085 = vunpack.c.l.b16 %v718
      %v1086 = vunpack.c.l.b16 %v719
      %v1087 = vunpack.c.l.b16 %v720
      %v1088 = vunpack.c.l.b16 %v721
      %v1089 = vunpack.c.l.b16 %v722
      %v1090 = vunpack.c.l.b16 %v723
      %v1091 = vunpack.c.l.b16 %v724
      %v1092 = vunpack.c.l.b16 %v725
      %v1093 = vunpack.c.l.b16 %v726
      %v1094 = vunpack.c.l.b16 %v727
      %v1095 = vunpack.c.l.b16 %v728
      %v1096 = vunpack.c.l.b16 %v729
      %v1097 = vunpack.c.l.b16 %v730
      %v1098 = vunpack.c.l.b16 %v731
      %v1099 = vunpack.c.l.b16 %v732
      %v1100 = vunpack.c.l.b16 %v733
      %v1101 = vunpack.c.l.b16 %v734
      %v1102 = vunpack.c.l.b16 %v735
      %v1103 = vunpack.c.l.b16 %v736
      %v1104 = vunpack.c.l.b16 %v737
      %v1105 = vunpack.c.l.b16 %v738
      %v1106 = vunpack.c.l.b16 %v739
      %v1107 = vunpack.c.l.b16 %v740
      %v1108 = vunpack.c.l.b16 %v741
      %v1109 = vunpack.c.l.b16 %v742
      %v1110 = vunpack.c.l.b16 %v743
      %v1111 = vunpack.c.l.b16 %v744
      %v1112 = vunpack.c.l.b16 %v745
      %v1113 = vunpack.c.l.b16 %v746
      %v1114 = vunpack.c.l.b16 %v747
      %v1115 = vunpack.c.l.b16 %v748
      %v1116 = vunpack.c.l.b16 %v749
      %v1117 = vunpack.c.l.b16 %v750
      %v1118 = vunpack.c.l.b16 %v751
      %v1119 = vunpack.c.l.b16 %v752
      %v1120 = vunpack.c.l.b16 %v753
      %v1121 = vunpack.c.l.b16 %v754
      %v1122 = vunpack.c.l.b16 %v755
      %v1123 = vunpack.c.l.b16 %v756
      %v1124 = vunpack.c.l.b16 %v757
      %v1125 = vunpack.c.l.b16 %v758
      %v1126 = vunpack.c.l.b16 %v759
      %v1127 = vunpack.c.l.b16 %v760
      %v1128 = vunpack.c.l.b16 %v761
      %v1129 = vunpack.c.l.b16 %v762
      %v1130 = vunpack.c.l.b16 %v763
      %v1131 = vunpack.c.l.b16 %v764
      %v1132 = vunpack.c.l.b16 %v765
      %v1133 = vunpack.c.l.b16 %v766
      %v1134 = vunpack.c.l.b16 %v767
      %v1135 = vunpack.c.l.b16 %v768
      %v1136 = vunpack.c.l.b16 %v769
      %v1137 = vunpack.c.l.b16 %v770
      %v1138 = vunpack.c.l.b16 %v771
      %v1139 = vunpack.c.l.b16 %v772
      %v1140 = vunpack.c.l.b16 %v773
      %v1141 = vunpack.c.l.b16 %v774
      %v1142 = vunpack.c.l.b16 %v775
      %v1143 = vunpack.c.l.b16 %v776
      %v1144 = vunpack.c.l.b16 %v777
      %v1145 = vunpack.c.l.b16 %v778
      %v1146 = vunpack.c.l.b16 %v779
      %v1147 = vunpack.c.l.b16 %v780
      %v1148 = vunpack.c.l.b16 %v781
      %v1149 = vunpack.c.l.b16 %v782
      %v1150 = vunpack.c.l.b16 %v783
      %v1151 = vunpack.c.l.b16 %v784
      %v1152 = vunpack.c.l.b16 %v785
      %v1153 = vunpack.c.l.b16 %v786
      %v1154 = vunpack.c.l.b16 %v787
      %v1155 = vunpack.c.l.b16 %v788
      %v1156 = vunpack.c.l.b16 %v789
      %v1157 = vunpack.c.l.b16 %v790
      %v1158 = vunpack.c.l.b16 %v791
      %v1159 = vunpack.c.l.b16 %v792
      %v1160 = vunpack.c.l.b16 %v793
      %v1161 = vunpack.c.l.b16 %v794
      %v1162 = vunpack.c.l.b16 %v795
      %v1163 = vunpack.c.l.b16 %v796
      %v1164 = vunpack.c.l.b16 %v797
      %v1165 = vunpack.c.l.b16 %v798
      %v1166 = vunpack.c.l.b16 %v799
      %v1167 = vunpack.c.l.b16 %v800
      %v1168 = vunpack.c.l.b16 %v801
      %v1169 = vunpack.c.l.b16 %v802
      %v1170 = vunpack.c.l.b16 %v803
      %v1171 = vunpack.c.l.b16 %v804
      %v1172 = vunpack.c.l.b16 %v805
      %v1173 = vunpack.c.l.b16 %v806
      %v1174 = vunpack.c.l.b16 %v807
      %v1175 = vunpack.c.l.b16 %v808
      %v1176 = vunpack.c.l.b16 %v809
      %v1177 = vunpack.c.l.b16 %v810
      %v1178 = vunpack.c.l.b16 %v811
      %v1179 = vunpack.c.l.b16 %v812
      %v1180 = vunpack.c.l.b16 %v813
      %v1181 = vunpack.c.l.b16 %v814
      %v1182 = vunpack.c.l.b16 %v815
      %v1183 = vunpack.c.l.b16 %v816
      %v1184 = vunpack.c.l.b16 %v817
      %v1185 = vunpack.c.l.b16 %v818
      %v1186 = vunpack.c.l.b16 %v819
      %v1187 = vunpack.c.l.b16 %v820
      %v1188 = vunpack.c.l.b16 %v821
      %v1189 = vunpack.c.l.b16 %v822
      %v1190 = vunpack.c.l.b16 %v823
      %v1191 = vunpack.c.l.b16 %v824
      %v1192 = vunpack.c.l.b16 %v825
      %v1193 = vunpack.c.l.b16 %v826
      %v1194 = vunpack.c.l.b16 %v827
      %v1195 = vunpack.c.l.b16 %v828
      %v1196 = vunpack.c.l.b16 %v829
      %v1197 = vunpack.c.l.b16 %v830
      %v1198 = vunpack.c.l.b16 %v831
      %v1199 = vunpack.c.l.b16 %v832
      %v1200 = vunpack.c.l.b16 %v833
      %v1201 = vunpack.c.l.b16 %v834
      %v1202 = vunpack.c.l.b16 %v835
      %v1203 = vunpack.c.l.b16 %v836
      %v1204 = vunpack.c.l.b16 %v837
      %v1205 = vunpack.c.l.b16 %v838
      %v1206 = vunpack.c.l.b16 %v839
      %v1207 = vunpack.c.l.b16 %v840
      %v1208 = vunpack.c.l.b16 %v841
      %v1209 = vunpack.c.l.b16 %v842
      %v1210 = vunpack.c.l.b16 %v843
      %v1211 = vunpack.c.l.b16 %v844
      %v1212 = vunpack.c.l.b16 %v845
      %v1213 = vunpack.c.l.b16 %v846
      %v1214 = vunpack.c.l.b16 %v847
      %v1215 = vunpack.c.l.b16 %v848
      %v1216 = vunpack.c.l.b16 %v849
      %v1217 = vunpack.c.l.b16 %v850
      %v1218 = vunpack.c.l.b16 %v851
      %v1219 = vunpack.c.l.b16 %v852
      %v1220 = vunpack.c.l.b16 %v853
      %v1221 = vunpack.c.l.b16 %v854
      %v1222 = vunpack.c.l.b16 %v855
      %v1223 = vunpack.c.l.b16 %v856
      %v1224 = vunpack.c.l.b16 %v857
      %v1225 = vunpack.c.l.b16 %v858
      %v1226 = vunpack.c.l.b16 %v859
      %v1227 = vunpack.c.l.b16 %v860
      %v1228 = vpack.c.b16 %v1085, %v1084
      %v1229 = vpack.c.b16 %v1087, %v1086
      %v1230 = vpack.c.b16 %v1089, %v1088
      %v1231 = vpack.c.b16 %v1091, %v1090
      %v1232 = vpack.c.b16 %v1093, %v1092
      %v1233 = vpack.c.b16 %v1095, %v1094
      %v1234 = vpack.c.b16 %v1097, %v1096
      %v1235 = vpack.c.b16 %v1099, %v1098
      %v1236 = vpack.c.b16 %v1101, %v1100
      %v1237 = vpack.c.b16 %v1103, %v1102
      %v1238 = vpack.c.b16 %v1105, %v1104
      %v1239 = vpack.c.b16 %v1107, %v1106
      %v1240 = vpack.c.b16 %v1109, %v1108
      %v1241 = vpack.c.b16 %v1111, %v1110
      %v1242 = vpack.c.b16 %v1113, %v1112
      %v1243 = vpack.c.b16 %v1115, %v1114
      %v1244 = vpack.c.b16 %v1117, %v1116
      %v1245 = vpack.c.b16 %v1119, %v1118
      %v1246 = vpack.c.b16 %v1121, %v1120
      %v1247 = vpack.c.b16 %v1123, %v1122
      %v1248 = vpack.c.b16 %v1125, %v1124
      %v1249 = vpack.c.b16 %v1127, %v1126
      %v1250 = vpack.c.b16 %v1129, %v1128
      %v1251 = vpack.c.b16 %v1131, %v1130
      %v1252 = vpack.c.b16 %v1133, %v1132
      %v1253 = vpack.c.b16 %v1135, %v1134
      %v1254 = vpack.c.b16 %v1137, %v1136
      %v1255 = vpack.c.b16 %v1139, %v1138
      %v1256 = vpack.c.b16 %v1141, %v1140
      %v1257 = vpack.c.b16 %v1143, %v1142
      %v1258 = vpack.c.b16 %v1145, %v1144
      %v1259 = vpack.c.b16 %v1147, %v1146
      %v1260 = vpack.c.b16 %v1149, %v1148
      %v1261 = vpack.c.b16 %v1151, %v1150
      %v1262 = vpack.c.b16 %v1153, %v1152
      %v1263 = vpack.c.b16 %v1155, %v1154
      %v1264 = vpack.c.b16 %v1157, %v1156
      %v1265 = vpack.c.b16 %v1159, %v1158
      %v1266 = vpack.c.b16 %v1161, %v1160
      %v1267 = vpack.c.b16 %v1163, %v1162
      %v1268 = vpack.c.b16 %v1165, %v1164
      %v1269 = vpack.c.b16 %v1167, %v1166
      %v1270 = vpack.c.b16 %v1169, %v1168
      %v1271 = vpack.c.b16 %v1171, %v1170
      %v1272 = vpack.c.b16 %v1173, %v1172
      %v1273 = vpack.c.b16 %v1175, %v1174
      %v1274 = vpack.c.b16 %v1177, %v1176
      %v1275 = vpack.c.b16 %v1179, %v1178
      %v1276 = vpack.c.b16 %v1181, %v1180
      %v1277 = vpack.c.b16 %v1183, %v1182
      %v1278 = vpack.c.b16 %v1185, %v1184
      %v1279 = vpack.c.b16 %v1187, %v1186
      %v1280 = vpack.c.b16 %v1189, %v1188
      %v1281 = vpack.c.b16 %v1191, %v1190
      %v1282 = vpack.c.b16 %v1193, %v1192
      %v1283 = vpack.c.b16 %v1195, %v1194
      %v1284 = vpack.c.b16 %v1197, %v1196
      %v1285 = vpack.c.b16 %v1199, %v1198
      %v1286 = vpack.c.b16 %v1201, %v1200
      %v1287 = vpack.c.b16 %v1203, %v1202
      %v1288 = vpack.c.b16 %v1205, %v1204
      %v1289 = vpack.c.b16 %v1207, %v1206
      %v1290 = vpack.c.b16 %v1209, %v1208
      %v1291 = vpack.c.b16 %v1211, %v1210
      %v1292 = vpack.c.b16 %v1213, %v1212
      %v1293 = vpack.c.b16 %v1215, %v1214
      %v1294 = vpack.c.b16 %v1217, %v1216
      %v1295 = vpack.c.b16 %v1219, %v1218
      %v1296 = vpack.c.b16 %v1221, %v1220
      %v1297 = vpack.c.b16 %v1223, %v1222
      %v1298 = vpack.c.b16 %v1225, %v1224
      %v1299 = vpack.c.b16 %v1227, %v1226
      %1372 = vmatprep.subr.bf16.mxu0 0
      %1373 = vmatpush1.bf16.msra.mxu0 %v1235
      %1374 = vmatprep.subr.bf16.mxu0 0
      %1375 = vmatpush1.bf16.msra.mxu0 %v1234
      %1376 = vmatprep.subr.bf16.mxu0 0
      %1377 = vmatpush1.bf16.msra.mxu0 %v1233
      %1378 = vmatprep.subr.bf16.mxu0 0
      %1379 = vmatpush1.bf16.msra.mxu0 %v1232
      %1380 = vmatprep.subr.bf16.mxu0 0
      %1381 = vmatpush1.bf16.msra.mxu0 %v1231
      %1382 = vmatprep.subr.bf16.mxu0 0
      %1383 = vmatpush1.bf16.msra.mxu0 %v1230
      %1384 = vmatprep.subr.bf16.mxu0 0
      %1385 = vmatpush1.bf16.msra.mxu0 %v1229
      %1386 = vmatprep.subr.bf16.mxu0 0
      %1387 = vmatpush1.bf16.msra.mxu0 %v1228
      %1388 = vmatprep.subr.bf16.mxu0 0
      %1389 = vmatpush2.bf16.msra.mxu0 %v1243
      %1390 = vmatprep.subr.bf16.mxu0 0
      %1391 = vmatpush2.bf16.msra.mxu0 %v1242
      %1392 = vmatprep.subr.bf16.mxu0 0
      %1393 = vmatpush2.bf16.msra.mxu0 %v1241
      %1394 = vmatprep.subr.bf16.mxu0 0
      %1395 = vmatpush2.bf16.msra.mxu0 %v1240
      %1396 = vmatprep.subr.bf16.mxu0 0
      %1397 = vmatpush2.bf16.msra.mxu0 %v1239
      %1398 = vmatprep.subr.bf16.mxu0 0
      %1399 = vmatpush2.bf16.msra.mxu0 %v1238
      %1400 = vmatprep.subr.bf16.mxu0 0
      %1401 = vmatpush2.bf16.msra.mxu0 %v1237
      %1402 = vmatprep.subr.bf16.mxu0 0
      %1403 = vmatpush2.bf16.msra.mxu0 %v1236
      %1404 = vmatprep.mubr.bf16.mxu0 %v869
      %1405 = vmatmul.mubr.bf16.gmra.mxu0 %v868
      %v1406 = vpop.f32.mrf.mxu0
      %v1407 = vadd.f32 %v866, %v1406
      %v1408 = vpop.f32.mrf.mxu0
      %v1409 = vpop.f32.mrf.mxu0
      %v1410 = vadd.f32 %v866, %v1409
      %v1411 = vpop.f32.mrf.mxu0
      %1412 = vmatprep.mubr.bf16.mxu0 %v878
      %1413 = vmatmul.mubr.bf16.gmra.mxu0 %v877
      %v1414 = vpop.f32.mrf.mxu0
      %v1415 = vadd.f32 %v866, %v1414
      %v1416 = vpop.f32.mrf.mxu0
      %v1417 = vpop.f32.mrf.mxu0
      %v1418 = vadd.f32 %v866, %v1417
      %v1419 = vpop.f32.mrf.mxu0
      %1420 = vmatprep.mubr.bf16.mxu0 %v887
      %1421 = vmatmul.mubr.bf16.gmra.mxu0 %v886
      %v1422 = vpop.f32.mrf.mxu0
      %v1423 = vadd.f32 %v866, %v1422
      %v1424 = vpop.f32.mrf.mxu0
      %v1425 = vpop.f32.mrf.mxu0
      %v1426 = vadd.f32 %v866, %v1425
      %v1427 = vpop.f32.mrf.mxu0
      %1428 = vmatprep.mubr.bf16.mxu0 %v896
      %1429 = vmatmul.mubr.bf16.gmra.mxu0 %v895
      %v1430 = vpop.f32.mrf.mxu0
      %v1431 = vadd.f32 %v866, %v1430
      %v1432 = vpop.f32.mrf.mxu0
      %v1433 = vpop.f32.mrf.mxu0
      %v1434 = vadd.f32 %v866, %v1433
      %v1435 = vpop.f32.mrf.mxu0
      %1436 = vdwg.mxu0
      %1437 = vmatprep.subr.bf16.mxu0 0
      %1438 = vmatpush1.bf16.msra.mxu0 %v1251
      %1439 = vmatprep.subr.bf16.mxu0 0
      %1440 = vmatpush1.bf16.msra.mxu0 %v1250
      %1441 = vmatprep.subr.bf16.mxu0 0
      %1442 = vmatpush1.bf16.msra.mxu0 %v1249
      %1443 = vmatprep.subr.bf16.mxu0 0
      %1444 = vmatpush1.bf16.msra.mxu0 %v1248
      %1445 = vmatprep.subr.bf16.mxu0 0
      %1446 = vmatpush1.bf16.msra.mxu0 %v1247
      %1447 = vmatprep.subr.bf16.mxu0 0
      %1448 = vmatpush1.bf16.msra.mxu0 %v1246
      %1449 = vmatprep.subr.bf16.mxu0 0
      %1450 = vmatpush1.bf16.msra.mxu0 %v1245
      %1451 = vmatprep.subr.bf16.mxu0 0
      %1452 = vmatpush1.bf16.msra.mxu0 %v1244
      %1453 = vmatprep.subr.bf16.mxu0 0
      %1454 = vmatpush2.bf16.msra.mxu0 %v1259
      %1455 = vmatprep.subr.bf16.mxu0 0
      %1456 = vmatpush2.bf16.msra.mxu0 %v1258
      %1457 = vmatprep.subr.bf16.mxu0 0
      %1458 = vmatpush2.bf16.msra.mxu0 %v1257
      %1459 = vmatprep.subr.bf16.mxu0 0
      %1460 = vmatpush2.bf16.msra.mxu0 %v1256
      %1461 = vmatprep.subr.bf16.mxu0 0
      %1462 = vmatpush2.bf16.msra.mxu0 %v1255
      %1463 = vmatprep.subr.bf16.mxu0 0
      %1464 = vmatpush2.bf16.msra.mxu0 %v1254
      %1465 = vmatprep.subr.bf16.mxu0 0
      %1466 = vmatpush2.bf16.msra.mxu0 %v1253
      %1467 = vmatprep.subr.bf16.mxu0 0
      %1468 = vmatpush2.bf16.msra.mxu0 %v1252
      %1469 = vmatprep.mubr.bf16.mxu0 %v871
      %1470 = vmatmul.mubr.bf16.gmra.mxu0 %v870
      %v1471 = vpop.f32.mrf.mxu0
      %v1472 = vadd.f32 %v1407, %v1471
      %v1473 = vpop.f32.mrf.mxu0
      %v1474 = vpop.f32.mrf.mxu0
      %v1475 = vadd.f32 %v1410, %v1474
      %v1476 = vpop.f32.mrf.mxu0
      %1477 = vmatprep.mubr.bf16.mxu0 %v880
      %1478 = vmatmul.mubr.bf16.gmra.mxu0 %v879
      %v1479 = vpop.f32.mrf.mxu0
      %v1480 = vadd.f32 %v1415, %v1479
      %v1481 = vpop.f32.mrf.mxu0
      %v1482 = vpop.f32.mrf.mxu0
      %v1483 = vadd.f32 %v1418, %v1482
      %v1484 = vpop.f32.mrf.mxu0
      %1485 = vmatprep.mubr.bf16.mxu0 %v889
      %1486 = vmatmul.mubr.bf16.gmra.mxu0 %v888
      %v1487 = vpop.f32.mrf.mxu0
      %v1488 = vadd.f32 %v1423, %v1487
      %v1489 = vpop.f32.mrf.mxu0
      %v1490 = vpop.f32.mrf.mxu0
      %v1491 = vadd.f32 %v1426, %v1490
      %v1492 = vpop.f32.mrf.mxu0
      %1493 = vmatprep.mubr.bf16.mxu0 %v898
      %1494 = vmatmul.mubr.bf16.gmra.mxu0 %v897
      %v1495 = vpop.f32.mrf.mxu0
      %v1496 = vadd.f32 %v1431, %v1495
      %v1497 = vpop.f32.mrf.mxu0
      %v1498 = vpop.f32.mrf.mxu0
      %v1499 = vadd.f32 %v1434, %v1498
      %v1500 = vpop.f32.mrf.mxu0
      %1501 = vdwg.mxu0
      %1502 = vmatprep.subr.bf16.mxu0 0
      %1503 = vmatpush1.bf16.msra.mxu0 %v1267
      %1504 = vmatprep.subr.bf16.mxu0 0
      %1505 = vmatpush1.bf16.msra.mxu0 %v1266
      %1506 = vmatprep.subr.bf16.mxu0 0
      %1507 = vmatpush1.bf16.msra.mxu0 %v1265
      %1508 = vmatprep.subr.bf16.mxu0 0
      %1509 = vmatpush1.bf16.msra.mxu0 %v1264
      %1510 = vmatprep.subr.bf16.mxu0 0
      %1511 = vmatpush1.bf16.msra.mxu0 %v1263
      %1512 = vmatprep.subr.bf16.mxu0 0
      %1513 = vmatpush1.bf16.msra.mxu0 %v1262
      %1514 = vmatprep.subr.bf16.mxu0 0
      %1515 = vmatpush1.bf16.msra.mxu0 %v1261
      %1516 = vmatprep.subr.bf16.mxu0 0
      %1517 = vmatpush1.bf16.msra.mxu0 %v1260
      %1518 = vmatprep.subr.bf16.mxu0 0
      %1519 = vmatpush2.bf16.msra.mxu0 %v1275
      %1520 = vmatprep.subr.bf16.mxu0 0
      %1521 = vmatpush2.bf16.msra.mxu0 %v1274
      %1522 = vmatprep.subr.bf16.mxu0 0
      %1523 = vmatpush2.bf16.msra.mxu0 %v1273
      %1524 = vmatprep.subr.bf16.mxu0 0
      %1525 = vmatpush2.bf16.msra.mxu0 %v1272
      %1526 = vmatprep.subr.bf16.mxu0 0
      %1527 = vmatpush2.bf16.msra.mxu0 %v1271
      %1528 = vmatprep.subr.bf16.mxu0 0
      %1529 = vmatpush2.bf16.msra.mxu0 %v1270
      %1530 = vmatprep.subr.bf16.mxu0 0
      %1531 = vmatpush2.bf16.msra.mxu0 %v1269
      %1532 = vmatprep.subr.bf16.mxu0 0
      %1533 = vmatpush2.bf16.msra.mxu0 %v1268
      %1534 = vmatprep.mubr.bf16.mxu0 %v873
      %1535 = vmatmul.mubr.bf16.gmra.mxu0 %v872
      %v1536 = vpop.f32.mrf.mxu0
      %v1537 = vadd.f32 %v1472, %v1536
      %v1538 = vpop.f32.mrf.mxu0
      %v1539 = vpop.f32.mrf.mxu0
      %v1540 = vadd.f32 %v1475, %v1539
      %v1541 = vpop.f32.mrf.mxu0
      %1542 = vmatprep.mubr.bf16.mxu0 %v882
      %1543 = vmatmul.mubr.bf16.gmra.mxu0 %v881
      %v1544 = vpop.f32.mrf.mxu0
      %v1545 = vadd.f32 %v1480, %v1544
      %v1546 = vpop.f32.mrf.mxu0
      %v1547 = vpop.f32.mrf.mxu0
      %v1548 = vadd.f32 %v1483, %v1547
      %v1549 = vpop.f32.mrf.mxu0
      %1550 = vmatprep.mubr.bf16.mxu0 %v891
      %1551 = vmatmul.mubr.bf16.gmra.mxu0 %v890
      %v1552 = vpop.f32.mrf.mxu0
      %v1553 = vadd.f32 %v1488, %v1552
      %v1554 = vpop.f32.mrf.mxu0
      %v1555 = vpop.f32.mrf.mxu0
      %v1556 = vadd.f32 %v1491, %v1555
      %v1557 = vpop.f32.mrf.mxu0
      %1558 = vmatprep.mubr.bf16.mxu0 %v900
      %1559 = vmatmul.mubr.bf16.gmra.mxu0 %v899
      %v1560 = vpop.f32.mrf.mxu0
      %v1561 = vadd.f32 %v1496, %v1560
      %v1562 = vpop.f32.mrf.mxu0
      %v1563 = vpop.f32.mrf.mxu0
      %v1564 = vadd.f32 %v1499, %v1563
      %v1565 = vpop.f32.mrf.mxu0
      %1566 = vdwg.mxu0
      %1567 = vmatprep.subr.bf16.mxu0 0
      %1568 = vmatpush1.bf16.msra.mxu0 %v1283
      %1569 = vmatprep.subr.bf16.mxu0 0
      %1570 = vmatpush1.bf16.msra.mxu0 %v1282
      %1571 = vmatprep.subr.bf16.mxu0 0
      %1572 = vmatpush1.bf16.msra.mxu0 %v1281
      %1573 = vmatprep.subr.bf16.mxu0 0
      %1574 = vmatpush1.bf16.msra.mxu0 %v1280
      %1575 = vmatprep.subr.bf16.mxu0 0
      %1576 = vmatpush1.bf16.msra.mxu0 %v1279
      %1577 = vmatprep.subr.bf16.mxu0 0
      %1578 = vmatpush1.bf16.msra.mxu0 %v1278
      %1579 = vmatprep.subr.bf16.mxu0 0
      %1580 = vmatpush1.bf16.msra.mxu0 %v1277
      %1581 = vmatprep.subr.bf16.mxu0 0
      %1582 = vmatpush1.bf16.msra.mxu0 %v1276
      %1583 = vmatprep.subr.bf16.mxu0 0
      %1584 = vmatpush2.bf16.msra.mxu0 %v1291
      %1585 = vmatprep.subr.bf16.mxu0 0
      %1586 = vmatpush2.bf16.msra.mxu0 %v1290
      %1587 = vmatprep.subr.bf16.mxu0 0
      %1588 = vmatpush2.bf16.msra.mxu0 %v1289
      %1589 = vmatprep.subr.bf16.mxu0 0
      %1590 = vmatpush2.bf16.msra.mxu0 %v1288
      %1591 = vmatprep.subr.bf16.mxu0 0
      %1592 = vmatpush2.bf16.msra.mxu0 %v1287
      %1593 = vmatprep.subr.bf16.mxu0 0
      %1594 = vmatpush2.bf16.msra.mxu0 %v1286
      %1595 = vmatprep.subr.bf16.mxu0 0
      %1596 = vmatpush2.bf16.msra.mxu0 %v1285
      %1597 = vmatprep.subr.bf16.mxu0 0
      %1598 = vmatpush2.bf16.msra.mxu0 %v1284
      %1599 = vmatprep.mubr.bf16.mxu0 %v875
      %1600 = vmatmul.mubr.bf16.gmra.mxu0 %v874
      %v1601 = vpop.f32.mrf.mxu0
      %v1602 = vadd.f32 %v1537, %v1601
      %v1603 = vpop.f32.mrf.mxu0
      %v1604 = vpop.f32.mrf.mxu0
      %v1605 = vadd.f32 %v1540, %v1604
      %v1606 = vpop.f32.mrf.mxu0
      %1607 = vmatprep.mubr.bf16.mxu0 %v884
      %1608 = vmatmul.mubr.bf16.gmra.mxu0 %v883
      %v1609 = vpop.f32.mrf.mxu0
      %v1610 = vadd.f32 %v1545, %v1609
      %v1611 = vpop.f32.mrf.mxu0
      %v1612 = vpop.f32.mrf.mxu0
      %v1613 = vadd.f32 %v1548, %v1612
      %v1614 = vpop.f32.mrf.mxu0
      %1615 = vmatprep.mubr.bf16.mxu0 %v893
      %1616 = vmatmul.mubr.bf16.gmra.mxu0 %v892
      %v1617 = vpop.f32.mrf.mxu0
      %v1618 = vadd.f32 %v1553, %v1617
      %v1619 = vpop.f32.mrf.mxu0
      %v1620 = vpop.f32.mrf.mxu0
      %v1621 = vadd.f32 %v1556, %v1620
      %v1622 = vpop.f32.mrf.mxu0
      %1623 = vmatprep.mubr.bf16.mxu0 %v902
      %1624 = vmatmul.mubr.bf16.gmra.mxu0 %v901
      %v1625 = vpop.f32.mrf.mxu0
      %v1626 = vadd.f32 %v1561, %v1625
      %v1627 = vpop.f32.mrf.mxu0
      %v1628 = vpop.f32.mrf.mxu0
      %v1629 = vadd.f32 %v1564, %v1628
      %v1630 = vpop.f32.mrf.mxu0
      %1631 = vdwg.mxu0
      %1632 = vmatprep.subr.bf16.mxu0 0
      %1633 = vmatpush1.bf16.msra.mxu0 %v1299
      %1634 = vmatprep.subr.bf16.mxu0 0
      %1635 = vmatpush1.bf16.msra.mxu0 %v1298
      %1636 = vmatprep.subr.bf16.mxu0 0
      %1637 = vmatpush1.bf16.msra.mxu0 %v1297
      %1638 = vmatprep.subr.bf16.mxu0 0
      %1639 = vmatpush1.bf16.msra.mxu0 %v1296
      %1640 = vmatprep.subr.bf16.mxu0 0
      %1641 = vmatpush1.bf16.msra.mxu0 %v1295
      %1642 = vmatprep.subr.bf16.mxu0 0
      %1643 = vmatpush1.bf16.msra.mxu0 %v1294
      %1644 = vmatprep.subr.bf16.mxu0 0
      %1645 = vmatpush1.bf16.msra.mxu0 %v1293
      %1646 = vmatprep.subr.bf16.mxu0 0
      %1647 = vmatpush1.bf16.msra.mxu0 %v1292
      %1648 = vmatprep.subr.bf16.mxu0 0
      %1649 = vmatpush2.bf16.msra.mxu0 0
      %1650 = vmatprep.subr.bf16.mxu0 0
      %1651 = vmatpush2.bf16.msra.mxu0 0
      %1652 = vmatprep.subr.bf16.mxu0 0
      %1653 = vmatpush2.bf16.msra.mxu0 0
      %1654 = vmatprep.subr.bf16.mxu0 0
      %1655 = vmatpush2.bf16.msra.mxu0 0
      %1656 = vmatprep.subr.bf16.mxu0 0
      %1657 = vmatpush2.bf16.msra.mxu0 0
      %1658 = vmatprep.subr.bf16.mxu0 0
      %1659 = vmatpush2.bf16.msra.mxu0 0
      %1660 = vmatprep.subr.bf16.mxu0 0
      %1661 = vmatpush2.bf16.msra.mxu0 0
      %1662 = vmatprep.subr.bf16.mxu0 0
      %1663 = vmatpush2.bf16.msra.mxu0 0
      %1664 = vmatprep.mubr.bf16.mxu0 0
      %1665 = vmatmul.mubr.bf16.gmra.mxu0 %v876
      %v1666 = vpop.f32.mrf.mxu0
      %v1667 = vadd.f32 %v1602, %v1666
      %v1668 = vpop.f32.mrf.mxu0
      %v1669 = vpop.f32.mrf.mxu0
      %v1670 = vadd.f32 %v1605, %v1669
      %v1671 = vpop.f32.mrf.mxu0
      %1672 = vmatprep.mubr.bf16.mxu0 0
      %1673 = vmatmul.mubr.bf16.gmra.mxu0 %v885
      %v1674 = vpop.f32.mrf.mxu0
      %v1675 = vadd.f32 %v1610, %v1674
      %v1676 = vpop.f32.mrf.mxu0
      %v1677 = vpop.f32.mrf.mxu0
      %v1678 = vadd.f32 %v1613, %v1677
      %v1679 = vpop.f32.mrf.mxu0
      %1680 = vmatprep.mubr.bf16.mxu0 0
      %1681 = vmatmul.mubr.bf16.gmra.mxu0 %v894
      %v1682 = vpop.f32.mrf.mxu0
      %v1683 = vadd.f32 %v1618, %v1682
      %v1684 = vpop.f32.mrf.mxu0
      %v1685 = vpop.f32.mrf.mxu0
      %v1686 = vadd.f32 %v1621, %v1685
      %v1687 = vpop.f32.mrf.mxu0
      %1688 = vmatprep.mubr.bf16.mxu0 0
      %1689 = vmatmul.mubr.bf16.gmra.mxu0 %v903
      %v1690 = vpop.f32.mrf.mxu0
      %v1691 = vadd.f32 %v1626, %v1690
      %v1692 = vpop.f32.mrf.mxu0
      %v1693 = vpop.f32.mrf.mxu0
      %v1694 = vadd.f32 %v1629, %v1693
      %v1695 = vpop.f32.mrf.mxu0
      %1696 = vdwg.mxu0
      %v1697 = vmax.f32 %v1667, 0.0
      %v1698 = vmax.f32 %v1670, 0.0
      %v1699 = vmax.f32 %v1675, 0.0
      %v1700 = vmax.f32 %v1678, 0.0
      %v1701 = vmax.f32 %v1683, 0.0
      %v1702 = vmax.f32 %v1686, 0.0
      %v1703 = vmax.f32 %v1691, 0.0
      %v1704 = vmax.f32 %v1694, 0.0
      %v1705 = vld [vmem:[%s5] sm:$0xf]
      %v1706 = vld [vmem:[%s5 + $0x4] sm:$0xf]
      %v1707 = vld [vmem:[%s5 + $0x8] sm:$0xf]
      %v1708 = vld [vmem:[%s5 + $0xc] sm:$0xf]
      %v1709 = vld [vmem:[%s5 + $0x10] sm:$0xf]
      %v1710 = vld [vmem:[%s5 + $0x14] sm:$0xf]
      %v1711 = vld [vmem:[%s5 + $0x18] sm:$0xf]
      %v1712 = vld [vmem:[%s5 + $0x1c] sm:$0xf]
      %v1713 = vld [vmem:[%s5 + $0x20] sm:$0xf]
      %v1714 = vld [vmem:[%s5 + $0x24] sm:$0xf]
      %v1715 = vld [vmem:[%s5 + $0x28] sm:$0xf]
      %v1716 = vld [vmem:[%s5 + $0x2c] sm:$0xf]
      %v1717 = vld [vmem:[%s5 + $0x30] sm:$0xf]
      %v1718 = vld [vmem:[%s5 + $0x34] sm:$0xf]
      %v1719 = vld [vmem:[%s5 + $0x38] sm:$0xf]
      %v1720 = vld [vmem:[%s5 + $0x3c] sm:$0xf]
      %v1721 = vld [vmem:[%s6] sm:$0x1]
      %v1723 = vlaneseq
      %v1724 = vshrl.u32 %v1723, 7
      %v1725 = vsub.s32 0, %v1724
      %v1726 = vrot.slane %v1721, %v1725
      %v1744 = vunpack.c.l.b16 %v1705
      %v1745 = vunpack.c.l.b16 %v1706
      %v1746 = vunpack.c.l.b16 %v1707
      %v1747 = vunpack.c.l.b16 %v1708
      %v1748 = vunpack.c.l.b16 %v1709
      %v1749 = vunpack.c.l.b16 %v1710
      %v1750 = vunpack.c.l.b16 %v1711
      %v1751 = vunpack.c.l.b16 %v1712
      %v1752 = vunpack.c.l.b16 %v1713
      %v1753 = vunpack.c.l.b16 %v1714
      %v1754 = vunpack.c.l.b16 %v1715
      %v1755 = vunpack.c.l.b16 %v1716
      %v1756 = vunpack.c.l.b16 %v1717
      %v1757 = vunpack.c.l.b16 %v1718
      %v1758 = vunpack.c.l.b16 %v1719
      %v1759 = vunpack.c.l.b16 %v1720
      %v1760 = vpack.c.b16 %v1745, %v1744
      %v1761 = vpack.c.b16 %v1747, %v1746
      %v1762 = vpack.c.b16 %v1749, %v1748
      %v1763 = vpack.c.b16 %v1751, %v1750
      %v1764 = vpack.c.b16 %v1753, %v1752
      %v1765 = vpack.c.b16 %v1755, %v1754
      %v1766 = vpack.c.b16 %v1757, %v1756
      %v1767 = vpack.c.b16 %v1759, %v1758
      %1776 = vmatprep.subr.bf16.mxu0 0
      %1777 = vmatpush1.bf16.msra.mxu0 %v1767
      %1778 = vmatprep.subr.bf16.mxu0 0
      %1779 = vmatpush1.bf16.msra.mxu0 %v1766
      %1780 = vmatprep.subr.bf16.mxu0 0
      %1781 = vmatpush1.bf16.msra.mxu0 %v1765
      %1782 = vmatprep.subr.bf16.mxu0 0
      %1783 = vmatpush1.bf16.msra.mxu0 %v1764
      %1784 = vmatprep.subr.bf16.mxu0 0
      %1785 = vmatpush1.bf16.msra.mxu0 %v1763
      %1786 = vmatprep.subr.bf16.mxu0 0
      %1787 = vmatpush1.bf16.msra.mxu0 %v1762
      %1788 = vmatprep.subr.bf16.mxu0 0
      %1789 = vmatpush1.bf16.msra.mxu0 %v1761
      %1790 = vmatprep.subr.bf16.mxu0 0
      %1791 = vmatpush1.bf16.msra.mxu0 %v1760
      %1792 = vmatprep.subr.bf16.mxu0 0
      %1793 = vmatpush2.bf16.msra.mxu0 0
      %1794 = vmatprep.subr.bf16.mxu0 0
      %1795 = vmatpush2.bf16.msra.mxu0 0
      %1796 = vmatprep.subr.bf16.mxu0 0
      %1797 = vmatpush2.bf16.msra.mxu0 0
      %1798 = vmatprep.subr.bf16.mxu0 0
      %1799 = vmatpush2.bf16.msra.mxu0 0
      %1800 = vmatprep.subr.bf16.mxu0 0
      %1801 = vmatpush2.bf16.msra.mxu0 0
      %1802 = vmatprep.subr.bf16.mxu0 0
      %1803 = vmatpush2.bf16.msra.mxu0 0
      %1804 = vmatprep.subr.bf16.mxu0 0
      %1805 = vmatpush2.bf16.msra.mxu0 0
      %1806 = vmatprep.subr.bf16.mxu0 0
      %1807 = vmatpush2.bf16.msra.mxu0 0
      %1808 = vmatprep.mubr.bf16.mxu0 0
      %1809 = vmatmul.mubr.bf16.gmra.mxu0 %v872
      %v1810 = vpop.f32.mrf.mxu0
      %v1811 = vadd.f32 %v1726, %v1810
      %v1812 = vpop.f32.mrf.mxu0
      %v1813 = vpop.f32.mrf.mxu0
      %v1814 = vadd.f32 %v1726, %v1813
      %v1815 = vpop.f32.mrf.mxu0
      %1816 = vmatprep.mubr.bf16.mxu0 0
      %1817 = vmatmul.mubr.bf16.gmra.mxu0 %v881
      %v1818 = vpop.f32.mrf.mxu0
      %v1819 = vadd.f32 %v1726, %v1818
      %v1820 = vpop.f32.mrf.mxu0
      %v1821 = vpop.f32.mrf.mxu0
      %v1822 = vadd.f32 %v1726, %v1821
      %v1823 = vpop.f32.mrf.mxu0
      %1824 = vmatprep.mubr.bf16.mxu0 0
      %1825 = vmatmul.mubr.bf16.gmra.mxu0 %v890
      %v1826 = vpop.f32.mrf.mxu0
      %v1827 = vadd.f32 %v1726, %v1826
      %v1828 = vpop.f32.mrf.mxu0
      %v1829 = vpop.f32.mrf.mxu0
      %v1830 = vadd.f32 %v1726, %v1829
      %v1831 = vpop.f32.mrf.mxu0
      %1832 = vmatprep.mubr.bf16.mxu0 0
      %1833 = vmatmul.mubr.bf16.gmra.mxu0 %v899
      %v1834 = vpop.f32.mrf.mxu0
      %v1835 = vadd.f32 %v1726, %v1834
      %v1836 = vpop.f32.mrf.mxu0
      %v1837 = vpop.f32.mrf.mxu0
      %v1838 = vadd.f32 %v1726, %v1837
      %v1839 = vpop.f32.mrf.mxu0
      %1840 = vdwg.mxu0
      %v1841 = vpack.c.bf16 %v1698, %v1697
      %v1842 = vpack.c.bf16 %v1700, %v1699
      %v1843 = vpack.c.bf16 %v1702, %v1701
      %v1844 = vpack.c.bf16 %v1704, %v1703
      %v1849 = vunpack.c.l.b16 %v1841
      %v1850 = vunpack.c.h.b16 %v1841
      %v1851 = vunpack.c.l.b16 %v1842
      %v1852 = vunpack.c.h.b16 %v1842
      %v1853 = vunpack.c.l.b16 %v1843
      %v1854 = vunpack.c.h.b16 %v1843
      %v1855 = vunpack.c.l.b16 %v1844
      %v1856 = vunpack.c.h.b16 %v1844
      %v1857 = vpack.c.b16 %v1849, %v1849
      %v1858 = vpack.c.b16 %v1850, %v1850
      %v1859 = vpack.c.b16 %v1851, %v1851
      %v1860 = vpack.c.b16 %v1852, %v1852
      %v1861 = vpack.c.b16 %v1853, %v1853
      %v1862 = vpack.c.b16 %v1854, %v1854
      %v1863 = vpack.c.b16 %v1855, %v1855
      %v1865 = vshrl.u32 0, 16
      %v1867 = vrot.slane %v1865, 7
      %v1868 = vshll.u32 0, 16
      %v1870 = vor.u32 %v1867, %v1868
      %v1872 = vshrl.u32 %v1857, 16
      %v1874 = vrot.slane %v1872, 7
      %v1875 = vshll.u32 %v1857, 16
      %v1877 = vor.u32 %v1874, %v1875
      %v1879 = vshrl.u32 %v1858, 16
      %v1881 = vrot.slane %v1879, 7
      %v1882 = vshll.u32 %v1858, 16
      %v1884 = vor.u32 %v1881, %v1882
      %v1886 = vshrl.u32 %v1859, 16
      %v1888 = vrot.slane %v1886, 7
      %v1889 = vshll.u32 %v1859, 16
      %v1891 = vor.u32 %v1888, %v1889
      %v1893 = vshrl.u32 %v1860, 16
      %v1895 = vrot.slane %v1893, 7
      %v1896 = vshll.u32 %v1860, 16
      %v1898 = vor.u32 %v1895, %v1896
      %v1900 = vshrl.u32 %v1861, 16
      %v1902 = vrot.slane %v1900, 7
      %v1903 = vshll.u32 %v1861, 16
      %v1905 = vor.u32 %v1902, %v1903
      %v1907 = vshrl.u32 %v1862, 16
      %v1909 = vrot.slane %v1907, 7
      %v1910 = vshll.u32 %v1862, 16
      %v1912 = vor.u32 %v1909, %v1910
      %v1914 = vshrl.u32 %v1863, 16
      %v1916 = vrot.slane %v1914, 7
      %v1917 = vshll.u32 %v1863, 16
      %v1919 = vor.u32 %v1916, %v1917
      %vm1928 = vcmask 1040384
      %vm1929 = vsmask.f32 256
      %vm1930 = vmand %vm1928, %vm1929
      %v1931 = vsel %vm1930, 0, %v1870
      %v1932 = vsel %vm1930, 0, %v1877
      %v1933 = vsel %vm1930, 0, %v1884
      %v1934 = vsel %vm1930, 0, %v1891
      %v1935 = vsel %vm1930, 0, %v1898
      %v1936 = vsel %vm1930, 0, %v1905
      %v1937 = vsel %vm1930, 0, %v1912
      %v1938 = vsel %vm1930, 0, %v1919
      %v1939 = vrot.slane %v1868, 1
      %v1940 = vor.u32 %v1865, %v1939
      %v1941 = vrot.slane %v1875, 1
      %v1942 = vor.u32 %v1872, %v1941
      %v1943 = vrot.slane %v1882, 1
      %v1944 = vor.u32 %v1879, %v1943
      %v1945 = vrot.slane %v1889, 1
      %v1946 = vor.u32 %v1886, %v1945
      %v1947 = vrot.slane %v1896, 1
      %v1948 = vor.u32 %v1893, %v1947
      %v1949 = vrot.slane %v1903, 1
      %v1950 = vor.u32 %v1900, %v1949
      %v1951 = vrot.slane %v1910, 1
      %v1952 = vor.u32 %v1907, %v1951
      %v1953 = vrot.slane %v1917, 1
      %v1954 = vor.u32 %v1914, %v1953
      %vm1963 = vcmask 1043456
      %vm1964 = vsmask.f32 3328
      %vm1965 = vmand %vm1963, %vm1964
      %v1966 = vsel %vm1965, %v1940, 0
      %v1967 = vsel %vm1965, %v1942, 0
      %v1968 = vsel %vm1965, %v1944, 0
      %v1969 = vsel %vm1965, %v1946, 0
      %v1970 = vsel %vm1965, %v1948, 0
      %v1971 = vsel %vm1965, %v1950, 0
      %v1972 = vsel %vm1965, %v1952, 0
      %v1973 = vsel %vm1965, %v1954, 0
      %v1974 = vpack.c.b16 %v1856, %v1856
      %v1976 = vshrl.u32 %v1974, 16
      %v1978 = vrot.slane %v1976, 7
      %v1979 = vshll.u32 %v1974, 16
      %v1981 = vor.u32 %v1978, %v1979
      %v1983 = vsel %vm1930, 0, %v1981
      %v1984 = vrot.slane %v1979, 1
      %v1985 = vor.u32 %v1976, %v1984
      %v1987 = vsel %vm1965, %v1985, 0
      %v1989 = vunpack.c.l.b16 0
      %v1990 = vpack.c.b16 %v1989, %v1989
      %v1992 = vshrl.u32 %v1990, 16
      %v1994 = vrot.slane %v1992, 7
      %v1995 = vshll.u32 %v1990, 16
      %v1997 = vor.u32 %v1994, %v1995
      %v1999 = vsel %vm1930, 0, %v1997
      %v2000 = vrot.slane %v1995, 1
      %v2001 = vor.u32 %v1992, %v2000
      %v2003 = vsel %vm1965, %v2001, 0
      %v2024 = vunpack.c.l.b16 %v1931
      %v2025 = vunpack.c.l.b16 %v1966
      %v2026 = vunpack.c.l.b16 %v1932
      %v2027 = vunpack.c.l.b16 %v1967
      %v2028 = vunpack.c.l.b16 %v1933
      %v2029 = vunpack.c.l.b16 %v1968
      %v2030 = vunpack.c.l.b16 %v1934
      %v2031 = vunpack.c.l.b16 %v1969
      %v2032 = vunpack.c.l.b16 %v1935
      %v2033 = vunpack.c.l.b16 %v1970
      %v2034 = vunpack.c.l.b16 %v1936
      %v2035 = vunpack.c.l.b16 %v1971
      %v2036 = vunpack.c.l.b16 %v1937
      %v2037 = vunpack.c.l.b16 %v1972
      %v2038 = vunpack.c.l.b16 %v1938
      %v2039 = vunpack.c.l.b16 %v1973
      %v2040 = vunpack.c.l.b16 %v1983
      %v2041 = vunpack.c.l.b16 %v1987
      %v2042 = vunpack.c.l.b16 %v1999
      %v2043 = vunpack.c.l.b16 %v2003
      %v2044 = vld [vmem:[%s2] sm:$0xf]
      %v2045 = vld [vmem:[%s2 + $0x4] sm:$0xf]
      %v2046 = vld [vmem:[%s2 + $0x8] sm:$0xf]
      %v2047 = vld [vmem:[%s2 + $0xc] sm:$0xf]
      %v2048 = vld [vmem:[%s2 + $0x10] sm:$0xf]
      %v2049 = vld [vmem:[%s2 + $0x14] sm:$0xf]
      %v2050 = vld [vmem:[%s2 + $0x18] sm:$0xf]
      %v2051 = vld [vmem:[%s2 + $0x1c] sm:$0xf]
      %v2052 = vld [vmem:[%s2 + $0x20] sm:$0xf]
      %v2053 = vld [vmem:[%s2 + $0x24] sm:$0xf]
      %v2054 = vld [vmem:[%s2 + $0x28] sm:$0xf]
      %v2055 = vld [vmem:[%s2 + $0x2c] sm:$0xf]
      %v2056 = vld [vmem:[%s2 + $0x30] sm:$0xf]
      %v2057 = vld [vmem:[%s2 + $0x34] sm:$0xf]
      %v2058 = vld [vmem:[%s2 + $0x38] sm:$0xf]
      %v2059 = vld [vmem:[%s2 + $0x3c] sm:$0xf]
      %v2060 = vld [vmem:[%s2 + $0x40] sm:$0xf]
      %v2061 = vld [vmem:[%s2 + $0x44] sm:$0xf]
      %v2062 = vld [vmem:[%s2 + $0x48] sm:$0xf]
      %v2063 = vld [vmem:[%s2 + $0x4c] sm:$0xf]
      %v2064 = vld [vmem:[%s2 + $0x50] sm:$0xf]
      %v2065 = vld [vmem:[%s2 + $0x54] sm:$0xf]
      %v2066 = vld [vmem:[%s2 + $0x58] sm:$0xf]
      %v2067 = vld [vmem:[%s2 + $0x5c] sm:$0xf]
      %v2068 = vld [vmem:[%s2 + $0x60] sm:$0xf]
      %v2069 = vld [vmem:[%s2 + $0x64] sm:$0xf]
      %v2070 = vld [vmem:[%s2 + $0x68] sm:$0xf]
      %v2071 = vld [vmem:[%s2 + $0x6c] sm:$0xf]
      %v2072 = vld [vmem:[%s2 + $0x70] sm:$0xf]
      %v2073 = vld [vmem:[%s2 + $0x74] sm:$0xf]
      %v2074 = vld [vmem:[%s2 + $0x78] sm:$0xf]
      %v2075 = vld [vmem:[%s2 + $0x7c] sm:$0xf]
      %v2076 = vld [vmem:[%s2 + $0x80] sm:$0xf]
      %v2077 = vld [vmem:[%s2 + $0x84] sm:$0xf]
      %v2078 = vld [vmem:[%s2 + $0x88] sm:$0xf]
      %v2079 = vld [vmem:[%s2 + $0x8c] sm:$0xf]
      %v2080 = vld [vmem:[%s2 + $0x90] sm:$0xf]
      %v2081 = vld [vmem:[%s2 + $0x94] sm:$0xf]
      %v2082 = vld [vmem:[%s2 + $0x98] sm:$0xf]
      %v2083 = vld [vmem:[%s2 + $0x9c] sm:$0xf]
      %v2084 = vld [vmem:[%s2 + $0xa0] sm:$0xf]
      %v2085 = vld [vmem:[%s2 + $0xa4] sm:$0xf]
      %v2086 = vld [vmem:[%s2 + $0xa8] sm:$0xf]
      %v2087 = vld [vmem:[%s2 + $0xac] sm:$0xf]
      %v2088 = vld [vmem:[%s2 + $0xb0] sm:$0xf]
      %v2089 = vld [vmem:[%s2 + $0xb4] sm:$0xf]
      %v2090 = vld [vmem:[%s2 + $0xb8] sm:$0xf]
      %v2091 = vld [vmem:[%s2 + $0xbc] sm:$0xf]
      %v2092 = vld [vmem:[%s2 + $0xc0] sm:$0xf]
      %v2093 = vld [vmem:[%s2 + $0xc4] sm:$0xf]
      %v2094 = vld [vmem:[%s2 + $0xc8] sm:$0xf]
      %v2095 = vld [vmem:[%s2 + $0xcc] sm:$0xf]
      %v2096 = vld [vmem:[%s2 + $0xd0] sm:$0xf]
      %v2097 = vld [vmem:[%s2 + $0xd4] sm:$0xf]
      %v2098 = vld [vmem:[%s2 + $0xd8] sm:$0xf]
      %v2099 = vld [vmem:[%s2 + $0xdc] sm:$0xf]
      %v2100 = vld [vmem:[%s2 + $0xe0] sm:$0xf]
      %v2101 = vld [vmem:[%s2 + $0xe4] sm:$0xf]
      %v2102 = vld [vmem:[%s2 + $0xe8] sm:$0xf]
      %v2103 = vld [vmem:[%s2 + $0xec] sm:$0xf]
      %v2104 = vld [vmem:[%s2 + $0xf0] sm:$0xf]
      %v2105 = vld [vmem:[%s2 + $0xf4] sm:$0xf]
      %v2106 = vld [vmem:[%s2 + $0xf8] sm:$0xf]
      %v2107 = vld [vmem:[%s2 + $0xfc] sm:$0xf]
      %v2108 = vld [vmem:[%s2 + $0x100] sm:$0xf]
      %v2109 = vld [vmem:[%s2 + $0x104] sm:$0xf]
      %v2110 = vld [vmem:[%s2 + $0x108] sm:$0xf]
      %v2111 = vld [vmem:[%s2 + $0x10c] sm:$0xf]
      %v2112 = vld [vmem:[%s2 + $0x110] sm:$0xf]
      %v2113 = vld [vmem:[%s2 + $0x114] sm:$0xf]
      %v2114 = vld [vmem:[%s2 + $0x118] sm:$0xf]
      %v2115 = vld [vmem:[%s2 + $0x11c] sm:$0xf]
      %v2116 = vld [vmem:[%s2 + $0x120] sm:$0xf]
      %v2117 = vld [vmem:[%s2 + $0x124] sm:$0xf]
      %v2118 = vld [vmem:[%s2 + $0x128] sm:$0xf]
      %v2119 = vld [vmem:[%s2 + $0x12c] sm:$0xf]
      %v2120 = vld [vmem:[%s2 + $0x130] sm:$0xf]
      %v2121 = vld [vmem:[%s2 + $0x134] sm:$0xf]
      %v2122 = vld [vmem:[%s2 + $0x138] sm:$0xf]
      %v2123 = vld [vmem:[%s2 + $0x13c] sm:$0xf]
      %v2124 = vld [vmem:[%s2 + $0x140] sm:$0xf]
      %v2125 = vld [vmem:[%s2 + $0x144] sm:$0xf]
      %v2126 = vld [vmem:[%s2 + $0x148] sm:$0xf]
      %v2127 = vld [vmem:[%s2 + $0x14c] sm:$0xf]
      %v2128 = vld [vmem:[%s2 + $0x150] sm:$0xf]
      %v2129 = vld [vmem:[%s2 + $0x154] sm:$0xf]
      %v2130 = vld [vmem:[%s2 + $0x158] sm:$0xf]
      %v2131 = vld [vmem:[%s2 + $0x15c] sm:$0xf]
      %v2132 = vld [vmem:[%s2 + $0x160] sm:$0xf]
      %v2133 = vld [vmem:[%s2 + $0x164] sm:$0xf]
      %v2134 = vld [vmem:[%s2 + $0x168] sm:$0xf]
      %v2135 = vld [vmem:[%s2 + $0x16c] sm:$0xf]
      %v2136 = vld [vmem:[%s2 + $0x170] sm:$0xf]
      %v2137 = vld [vmem:[%s2 + $0x174] sm:$0xf]
      %v2138 = vld [vmem:[%s2 + $0x178] sm:$0xf]
      %v2139 = vld [vmem:[%s2 + $0x17c] sm:$0xf]
      %v2140 = vld [vmem:[%s2 + $0x180] sm:$0xf]
      %v2141 = vld [vmem:[%s2 + $0x184] sm:$0xf]
      %v2142 = vld [vmem:[%s2 + $0x188] sm:$0xf]
      %v2143 = vld [vmem:[%s2 + $0x18c] sm:$0xf]
      %v2144 = vld [vmem:[%s2 + $0x190] sm:$0xf]
      %v2145 = vld [vmem:[%s2 + $0x194] sm:$0xf]
      %v2146 = vld [vmem:[%s2 + $0x198] sm:$0xf]
      %v2147 = vld [vmem:[%s2 + $0x19c] sm:$0xf]
      %v2148 = vld [vmem:[%s2 + $0x1a0] sm:$0xf]
      %v2149 = vld [vmem:[%s2 + $0x1a4] sm:$0xf]
      %v2150 = vld [vmem:[%s2 + $0x1a8] sm:$0xf]
      %v2151 = vld [vmem:[%s2 + $0x1ac] sm:$0xf]
      %v2152 = vld [vmem:[%s2 + $0x1b0] sm:$0xf]
      %v2153 = vld [vmem:[%s2 + $0x1b4] sm:$0xf]
      %v2154 = vld [vmem:[%s2 + $0x1b8] sm:$0xf]
      %v2155 = vld [vmem:[%s2 + $0x1bc] sm:$0xf]
      %v2156 = vld [vmem:[%s2 + $0x1c0] sm:$0xf]
      %v2157 = vld [vmem:[%s2 + $0x1c4] sm:$0xf]
      %v2158 = vld [vmem:[%s2 + $0x1c8] sm:$0xf]
      %v2159 = vld [vmem:[%s2 + $0x1cc] sm:$0xf]
      %v2160 = vld [vmem:[%s2 + $0x1d0] sm:$0xf]
      %v2161 = vld [vmem:[%s2 + $0x1d4] sm:$0xf]
      %v2162 = vld [vmem:[%s2 + $0x1d8] sm:$0xf]
      %v2163 = vld [vmem:[%s2 + $0x1dc] sm:$0xf]
      %v2164 = vld [vmem:[%s2 + $0x1e0] sm:$0xf]
      %v2165 = vld [vmem:[%s2 + $0x1e4] sm:$0xf]
      %v2166 = vld [vmem:[%s2 + $0x1e8] sm:$0xf]
      %v2167 = vld [vmem:[%s2 + $0x1ec] sm:$0xf]
      %v2168 = vld [vmem:[%s2 + $0x1f0] sm:$0xf]
      %v2169 = vld [vmem:[%s2 + $0x1f4] sm:$0xf]
      %v2170 = vld [vmem:[%s2 + $0x1f8] sm:$0xf]
      %v2171 = vld [vmem:[%s2 + $0x1fc] sm:$0xf]
      %v2172 = vld [vmem:[%s2 + $0x200] sm:$0xf]
      %v2173 = vld [vmem:[%s2 + $0x204] sm:$0xf]
      %v2174 = vld [vmem:[%s2 + $0x208] sm:$0xf]
      %v2175 = vld [vmem:[%s2 + $0x20c] sm:$0xf]
      %v2176 = vld [vmem:[%s2 + $0x210] sm:$0xf]
      %v2177 = vld [vmem:[%s2 + $0x214] sm:$0xf]
      %v2178 = vld [vmem:[%s2 + $0x218] sm:$0xf]
      %v2179 = vld [vmem:[%s2 + $0x21c] sm:$0xf]
      %v2180 = vld [vmem:[%s2 + $0x220] sm:$0xf]
      %v2181 = vld [vmem:[%s2 + $0x224] sm:$0xf]
      %v2182 = vld [vmem:[%s2 + $0x228] sm:$0xf]
      %v2183 = vld [vmem:[%s2 + $0x22c] sm:$0xf]
      %v2184 = vld [vmem:[%s2 + $0x230] sm:$0xf]
      %v2185 = vld [vmem:[%s2 + $0x234] sm:$0xf]
      %v2186 = vld [vmem:[%s2 + $0x238] sm:$0xf]
      %v2187 = vld [vmem:[%s2 + $0x23c] sm:$0xf]
      %v2188 = vld [vmem:[%s4] sm:$0x1]
      %v2190 = vlaneseq
      %v2191 = vshrl.u32 %v2190, 7
      %v2192 = vsub.s32 0, %v2191
      %v2193 = vrot.slane %v2188, %v2192
      %v2195 = vpack.c.b16 %v2026, %v2024
      %v2196 = vpack.c.b16 %v1849, %v1989
      %v2197 = vpack.c.b16 %v2027, %v2025
      %v2198 = vpack.c.b16 %v2028, %v2026
      %v2199 = vpack.c.b16 %v1850, %v1849
      %v2200 = vpack.c.b16 %v2029, %v2027
      %v2201 = vpack.c.b16 %v2030, %v2028
      %v2202 = vpack.c.b16 %v1851, %v1850
      %v2203 = vpack.c.b16 %v2031, %v2029
      %v2204 = vpack.c.b16 %v2032, %v2030
      %v2205 = vpack.c.b16 %v1852, %v1851
      %v2206 = vpack.c.b16 %v2033, %v2031
      %v2207 = vpack.c.b16 %v2034, %v2032
      %v2208 = vpack.c.b16 %v1853, %v1852
      %v2209 = vpack.c.b16 %v2035, %v2033
      %v2210 = vpack.c.b16 %v2036, %v2034
      %v2211 = vpack.c.b16 %v1854, %v1853
      %v2212 = vpack.c.b16 %v2037, %v2035
      %v2213 = vpack.c.b16 %v2038, %v2036
      %v2214 = vpack.c.b16 %v1855, %v1854
      %v2215 = vpack.c.b16 %v2039, %v2037
      %v2216 = vpack.c.b16 %v2040, %v2038
      %v2217 = vpack.c.b16 %v1856, %v1855
      %v2218 = vpack.c.b16 %v2041, %v2039
      %v2219 = vpack.c.b16 %v2042, %v2040
      %v2220 = vpack.c.b16 %v1989, %v1856
      %v2221 = vpack.c.b16 %v2043, %v2041
      %v2393 = vunpack.c.l.b16 %v2044
      %v2394 = vunpack.c.l.b16 %v2045
      %v2395 = vunpack.c.l.b16 %v2046
      %v2396 = vunpack.c.l.b16 %v2047
      %v2397 = vunpack.c.l.b16 %v2048
      %v2398 = vunpack.c.l.b16 %v2049
      %v2399 = vunpack.c.l.b16 %v2050
      %v2400 = vunpack.c.l.b16 %v2051
      %v2401 = vunpack.c.l.b16 %v2052
      %v2402 = vunpack.c.l.b16 %v2053
      %v2403 = vunpack.c.l.b16 %v2054
      %v2404 = vunpack.c.l.b16 %v2055
      %v2405 = vunpack.c.l.b16 %v2056
      %v2406 = vunpack.c.l.b16 %v2057
      %v2407 = vunpack.c.l.b16 %v2058
      %v2408 = vunpack.c.l.b16 %v2059
      %v2409 = vunpack.c.l.b16 %v2060
      %v2410 = vunpack.c.l.b16 %v2061
      %v2411 = vunpack.c.l.b16 %v2062
      %v2412 = vunpack.c.l.b16 %v2063
      %v2413 = vunpack.c.l.b16 %v2064
      %v2414 = vunpack.c.l.b16 %v2065
      %v2415 = vunpack.c.l.b16 %v2066
      %v2416 = vunpack.c.l.b16 %v2067
      %v2417 = vunpack.c.l.b16 %v2068
      %v2418 = vunpack.c.l.b16 %v2069
      %v2419 = vunpack.c.l.b16 %v2070
      %v2420 = vunpack.c.l.b16 %v2071
      %v2421 = vunpack.c.l.b16 %v2072
      %v2422 = vunpack.c.l.b16 %v2073
      %v2423 = vunpack.c.l.b16 %v2074
      %v2424 = vunpack.c.l.b16 %v2075
      %v2425 = vunpack.c.l.b16 %v2076
      %v2426 = vunpack.c.l.b16 %v2077
      %v2427 = vunpack.c.l.b16 %v2078
      %v2428 = vunpack.c.l.b16 %v2079
      %v2429 = vunpack.c.l.b16 %v2080
      %v2430 = vunpack.c.l.b16 %v2081
      %v2431 = vunpack.c.l.b16 %v2082
      %v2432 = vunpack.c.l.b16 %v2083
      %v2433 = vunpack.c.l.b16 %v2084
      %v2434 = vunpack.c.l.b16 %v2085
      %v2435 = vunpack.c.l.b16 %v2086
      %v2436 = vunpack.c.l.b16 %v2087
      %v2437 = vunpack.c.l.b16 %v2088
      %v2438 = vunpack.c.l.b16 %v2089
      %v2439 = vunpack.c.l.b16 %v2090
      %v2440 = vunpack.c.l.b16 %v2091
      %v2441 = vunpack.c.l.b16 %v2092
      %v2442 = vunpack.c.l.b16 %v2093
      %v2443 = vunpack.c.l.b16 %v2094
      %v2444 = vunpack.c.l.b16 %v2095
      %v2445 = vunpack.c.l.b16 %v2096
      %v2446 = vunpack.c.l.b16 %v2097
      %v2447 = vunpack.c.l.b16 %v2098
      %v2448 = vunpack.c.l.b16 %v2099
      %v2449 = vunpack.c.l.b16 %v2100
      %v2450 = vunpack.c.l.b16 %v2101
      %v2451 = vunpack.c.l.b16 %v2102
      %v2452 = vunpack.c.l.b16 %v2103
      %v2453 = vunpack.c.l.b16 %v2104
      %v2454 = vunpack.c.l.b16 %v2105
      %v2455 = vunpack.c.l.b16 %v2106
      %v2456 = vunpack.c.l.b16 %v2107
      %v2457 = vunpack.c.l.b16 %v2108
      %v2458 = vunpack.c.l.b16 %v2109
      %v2459 = vunpack.c.l.b16 %v2110
      %v2460 = vunpack.c.l.b16 %v2111
      %v2461 = vunpack.c.l.b16 %v2112
      %v2462 = vunpack.c.l.b16 %v2113
      %v2463 = vunpack.c.l.b16 %v2114
      %v2464 = vunpack.c.l.b16 %v2115
      %v2465 = vunpack.c.l.b16 %v2116
      %v2466 = vunpack.c.l.b16 %v2117
      %v2467 = vunpack.c.l.b16 %v2118
      %v2468 = vunpack.c.l.b16 %v2119
      %v2469 = vunpack.c.l.b16 %v2120
      %v2470 = vunpack.c.l.b16 %v2121
      %v2471 = vunpack.c.l.b16 %v2122
      %v2472 = vunpack.c.l.b16 %v2123
      %v2473 = vunpack.c.l.b16 %v2124
      %v2474 = vunpack.c.l.b16 %v2125
      %v2475 = vunpack.c.l.b16 %v2126
      %v2476 = vunpack.c.l.b16 %v2127
      %v2477 = vunpack.c.l.b16 %v2128
      %v2478 = vunpack.c.l.b16 %v2129
      %v2479 = vunpack.c.l.b16 %v2130
      %v2480 = vunpack.c.l.b16 %v2131
      %v2481 = vunpack.c.l.b16 %v2132
      %v2482 = vunpack.c.l.b16 %v2133
      %v2483 = vunpack.c.l.b16 %v2134
      %v2484 = vunpack.c.l.b16 %v2135
      %v2485 = vunpack.c.l.b16 %v2136
      %v2486 = vunpack.c.l.b16 %v2137
      %v2487 = vunpack.c.l.b16 %v2138
      %v2488 = vunpack.c.l.b16 %v2139
      %v2489 = vunpack.c.l.b16 %v2140
      %v2490 = vunpack.c.l.b16 %v2141
      %v2491 = vunpack.c.l.b16 %v2142
      %v2492 = vunpack.c.l.b16 %v2143
      %v2493 = vunpack.c.l.b16 %v2144
      %v2494 = vunpack.c.l.b16 %v2145
      %v2495 = vunpack.c.l.b16 %v2146
      %v2496 = vunpack.c.l.b16 %v2147
      %v2497 = vunpack.c.l.b16 %v2148
      %v2498 = vunpack.c.l.b16 %v2149
      %v2499 = vunpack.c.l.b16 %v2150
      %v2500 = vunpack.c.l.b16 %v2151
      %v2501 = vunpack.c.l.b16 %v2152
      %v2502 = vunpack.c.l.b16 %v2153
      %v2503 = vunpack.c.l.b16 %v2154
      %v2504 = vunpack.c.l.b16 %v2155
      %v2505 = vunpack.c.l.b16 %v2156
      %v2506 = vunpack.c.l.b16 %v2157
      %v2507 = vunpack.c.l.b16 %v2158
      %v2508 = vunpack.c.l.b16 %v2159
      %v2509 = vunpack.c.l.b16 %v2160
      %v2510 = vunpack.c.l.b16 %v2161
      %v2511 = vunpack.c.l.b16 %v2162
      %v2512 = vunpack.c.l.b16 %v2163
      %v2513 = vunpack.c.l.b16 %v2164
      %v2514 = vunpack.c.l.b16 %v2165
      %v2515 = vunpack.c.l.b16 %v2166
      %v2516 = vunpack.c.l.b16 %v2167
      %v2517 = vunpack.c.l.b16 %v2168
      %v2518 = vunpack.c.l.b16 %v2169
      %v2519 = vunpack.c.l.b16 %v2170
      %v2520 = vunpack.c.l.b16 %v2171
      %v2521 = vunpack.c.l.b16 %v2172
      %v2522 = vunpack.c.l.b16 %v2173
      %v2523 = vunpack.c.l.b16 %v2174
      %v2524 = vunpack.c.l.b16 %v2175
      %v2525 = vunpack.c.l.b16 %v2176
      %v2526 = vunpack.c.l.b16 %v2177
      %v2527 = vunpack.c.l.b16 %v2178
      %v2528 = vunpack.c.l.b16 %v2179
      %v2529 = vunpack.c.l.b16 %v2180
      %v2530 = vunpack.c.l.b16 %v2181
      %v2531 = vunpack.c.l.b16 %v2182
      %v2532 = vunpack.c.l.b16 %v2183
      %v2533 = vunpack.c.l.b16 %v2184
      %v2534 = vunpack.c.l.b16 %v2185
      %v2535 = vunpack.c.l.b16 %v2186
      %v2536 = vunpack.c.l.b16 %v2187
      %v2537 = vpack.c.b16 %v2394, %v2393
      %v2538 = vpack.c.b16 %v2396, %v2395
      %v2539 = vpack.c.b16 %v2398, %v2397
      %v2540 = vpack.c.b16 %v2400, %v2399
      %v2541 = vpack.c.b16 %v2402, %v2401
      %v2542 = vpack.c.b16 %v2404, %v2403
      %v2543 = vpack.c.b16 %v2406, %v2405
      %v2544 = vpack.c.b16 %v2408, %v2407
      %v2545 = vpack.c.b16 %v2410, %v2409
      %v2546 = vpack.c.b16 %v2412, %v2411
      %v2547 = vpack.c.b16 %v2414, %v2413
      %v2548 = vpack.c.b16 %v2416, %v2415
      %v2549 = vpack.c.b16 %v2418, %v2417
      %v2550 = vpack.c.b16 %v2420, %v2419
      %v2551 = vpack.c.b16 %v2422, %v2421
      %v2552 = vpack.c.b16 %v2424, %v2423
      %v2553 = vpack.c.b16 %v2426, %v2425
      %v2554 = vpack.c.b16 %v2428, %v2427
      %v2555 = vpack.c.b16 %v2430, %v2429
      %v2556 = vpack.c.b16 %v2432, %v2431
      %v2557 = vpack.c.b16 %v2434, %v2433
      %v2558 = vpack.c.b16 %v2436, %v2435
      %v2559 = vpack.c.b16 %v2438, %v2437
      %v2560 = vpack.c.b16 %v2440, %v2439
      %v2561 = vpack.c.b16 %v2442, %v2441
      %v2562 = vpack.c.b16 %v2444, %v2443
      %v2563 = vpack.c.b16 %v2446, %v2445
      %v2564 = vpack.c.b16 %v2448, %v2447
      %v2565 = vpack.c.b16 %v2450, %v2449
      %v2566 = vpack.c.b16 %v2452, %v2451
      %v2567 = vpack.c.b16 %v2454, %v2453
      %v2568 = vpack.c.b16 %v2456, %v2455
      %v2569 = vpack.c.b16 %v2458, %v2457
      %v2570 = vpack.c.b16 %v2460, %v2459
      %v2571 = vpack.c.b16 %v2462, %v2461
      %v2572 = vpack.c.b16 %v2464, %v2463
      %v2573 = vpack.c.b16 %v2466, %v2465
      %v2574 = vpack.c.b16 %v2468, %v2467
      %v2575 = vpack.c.b16 %v2470, %v2469
      %v2576 = vpack.c.b16 %v2472, %v2471
      %v2577 = vpack.c.b16 %v2474, %v2473
      %v2578 = vpack.c.b16 %v2476, %v2475
      %v2579 = vpack.c.b16 %v2478, %v2477
      %v2580 = vpack.c.b16 %v2480, %v2479
      %v2581 = vpack.c.b16 %v2482, %v2481
      %v2582 = vpack.c.b16 %v2484, %v2483
      %v2583 = vpack.c.b16 %v2486, %v2485
      %v2584 = vpack.c.b16 %v2488, %v2487
      %v2585 = vpack.c.b16 %v2490, %v2489
      %v2586 = vpack.c.b16 %v2492, %v2491
      %v2587 = vpack.c.b16 %v2494, %v2493
      %v2588 = vpack.c.b16 %v2496, %v2495
      %v2589 = vpack.c.b16 %v2498, %v2497
      %v2590 = vpack.c.b16 %v2500, %v2499
      %v2591 = vpack.c.b16 %v2502, %v2501
      %v2592 = vpack.c.b16 %v2504, %v2503
      %v2593 = vpack.c.b16 %v2506, %v2505
      %v2594 = vpack.c.b16 %v2508, %v2507
      %v2595 = vpack.c.b16 %v2510, %v2509
      %v2596 = vpack.c.b16 %v2512, %v2511
      %v2597 = vpack.c.b16 %v2514, %v2513
      %v2598 = vpack.c.b16 %v2516, %v2515
      %v2599 = vpack.c.b16 %v2518, %v2517
      %v2600 = vpack.c.b16 %v2520, %v2519
      %v2601 = vpack.c.b16 %v2522, %v2521
      %v2602 = vpack.c.b16 %v2524, %v2523
      %v2603 = vpack.c.b16 %v2526, %v2525
      %v2604 = vpack.c.b16 %v2528, %v2527
      %v2605 = vpack.c.b16 %v2530, %v2529
      %v2606 = vpack.c.b16 %v2532, %v2531
      %v2607 = vpack.c.b16 %v2534, %v2533
      %v2608 = vpack.c.b16 %v2536, %v2535
      %2681 = vmatprep.subr.bf16.mxu0 0
      %2682 = vmatpush1.bf16.msra.mxu0 %v2544
      %2683 = vmatprep.subr.bf16.mxu0 0
      %2684 = vmatpush1.bf16.msra.mxu0 %v2543
      %2685 = vmatprep.subr.bf16.mxu0 0
      %2686 = vmatpush1.bf16.msra.mxu0 %v2542
      %2687 = vmatprep.subr.bf16.mxu0 0
      %2688 = vmatpush1.bf16.msra.mxu0 %v2541
      %2689 = vmatprep.subr.bf16.mxu0 0
      %2690 = vmatpush1.bf16.msra.mxu0 %v2540
      %2691 = vmatprep.subr.bf16.mxu0 0
      %2692 = vmatpush1.bf16.msra.mxu0 %v2539
      %2693 = vmatprep.subr.bf16.mxu0 0
      %2694 = vmatpush1.bf16.msra.mxu0 %v2538
      %2695 = vmatprep.subr.bf16.mxu0 0
      %2696 = vmatpush1.bf16.msra.mxu0 %v2537
      %2697 = vmatprep.subr.bf16.mxu0 0
      %2698 = vmatpush2.bf16.msra.mxu0 %v2552
      %2699 = vmatprep.subr.bf16.mxu0 0
      %2700 = vmatpush2.bf16.msra.mxu0 %v2551
      %2701 = vmatprep.subr.bf16.mxu0 0
      %2702 = vmatpush2.bf16.msra.mxu0 %v2550
      %2703 = vmatprep.subr.bf16.mxu0 0
      %2704 = vmatpush2.bf16.msra.mxu0 %v2549
      %2705 = vmatprep.subr.bf16.mxu0 0
      %2706 = vmatpush2.bf16.msra.mxu0 %v2548
      %2707 = vmatprep.subr.bf16.mxu0 0
      %2708 = vmatpush2.bf16.msra.mxu0 %v2547
      %2709 = vmatprep.subr.bf16.mxu0 0
      %2710 = vmatpush2.bf16.msra.mxu0 %v2546
      %2711 = vmatprep.subr.bf16.mxu0 0
      %2712 = vmatpush2.bf16.msra.mxu0 %v2545
      %2713 = vmatprep.mubr.bf16.mxu0 %v2196
      %2714 = vmatmul.mubr.bf16.gmra.mxu0 %v2195
      %v2715 = vpop.f32.mrf.mxu0
      %v2716 = vadd.f32 %v2193, %v2715
      %v2717 = vpop.f32.mrf.mxu0
      %v2718 = vpop.f32.mrf.mxu0
      %v2719 = vadd.f32 %v2193, %v2718
      %v2720 = vpop.f32.mrf.mxu0
      %2721 = vmatprep.mubr.bf16.mxu0 %v2202
      %2722 = vmatmul.mubr.bf16.gmra.mxu0 %v2201
      %v2723 = vpop.f32.mrf.mxu0
      %v2724 = vadd.f32 %v2193, %v2723
      %v2725 = vpop.f32.mrf.mxu0
      %v2726 = vpop.f32.mrf.mxu0
      %v2727 = vadd.f32 %v2193, %v2726
      %v2728 = vpop.f32.mrf.mxu0
      %2729 = vmatprep.mubr.bf16.mxu0 %v2208
      %2730 = vmatmul.mubr.bf16.gmra.mxu0 %v2207
      %v2731 = vpop.f32.mrf.mxu0
      %v2732 = vadd.f32 %v2193, %v2731
      %v2733 = vpop.f32.mrf.mxu0
      %v2734 = vpop.f32.mrf.mxu0
      %v2735 = vadd.f32 %v2193, %v2734
      %v2736 = vpop.f32.mrf.mxu0
      %2737 = vmatprep.mubr.bf16.mxu0 %v2214
      %2738 = vmatmul.mubr.bf16.gmra.mxu0 %v2213
      %v2739 = vpop.f32.mrf.mxu0
      %v2740 = vadd.f32 %v2193, %v2739
      %v2741 = vpop.f32.mrf.mxu0
      %v2742 = vpop.f32.mrf.mxu0
      %v2743 = vadd.f32 %v2193, %v2742
      %v2744 = vpop.f32.mrf.mxu0
      %2745 = vdwg.mxu0
      %2746 = vmatprep.subr.bf16.mxu0 0
      %2747 = vmatpush1.bf16.msra.mxu0 %v2560
      %2748 = vmatprep.subr.bf16.mxu0 0
      %2749 = vmatpush1.bf16.msra.mxu0 %v2559
      %2750 = vmatprep.subr.bf16.mxu0 0
      %2751 = vmatpush1.bf16.msra.mxu0 %v2558
      %2752 = vmatprep.subr.bf16.mxu0 0
      %2753 = vmatpush1.bf16.msra.mxu0 %v2557
      %2754 = vmatprep.subr.bf16.mxu0 0
      %2755 = vmatpush1.bf16.msra.mxu0 %v2556
      %2756 = vmatprep.subr.bf16.mxu0 0
      %2757 = vmatpush1.bf16.msra.mxu0 %v2555
      %2758 = vmatprep.subr.bf16.mxu0 0
      %2759 = vmatpush1.bf16.msra.mxu0 %v2554
      %2760 = vmatprep.subr.bf16.mxu0 0
      %2761 = vmatpush1.bf16.msra.mxu0 %v2553
      %2762 = vmatprep.subr.bf16.mxu0 0
      %2763 = vmatpush2.bf16.msra.mxu0 %v2568
      %2764 = vmatprep.subr.bf16.mxu0 0
      %2765 = vmatpush2.bf16.msra.mxu0 %v2567
      %2766 = vmatprep.subr.bf16.mxu0 0
      %2767 = vmatpush2.bf16.msra.mxu0 %v2566
      %2768 = vmatprep.subr.bf16.mxu0 0
      %2769 = vmatpush2.bf16.msra.mxu0 %v2565
      %2770 = vmatprep.subr.bf16.mxu0 0
      %2771 = vmatpush2.bf16.msra.mxu0 %v2564
      %2772 = vmatprep.subr.bf16.mxu0 0
      %2773 = vmatpush2.bf16.msra.mxu0 %v2563
      %2774 = vmatprep.subr.bf16.mxu0 0
      %2775 = vmatpush2.bf16.msra.mxu0 %v2562
      %2776 = vmatprep.subr.bf16.mxu0 0
      %2777 = vmatpush2.bf16.msra.mxu0 %v2561
      %2778 = vmatprep.mubr.bf16.mxu0 %v2198
      %2779 = vmatmul.mubr.bf16.gmra.mxu0 %v2197
      %v2780 = vpop.f32.mrf.mxu0
      %v2781 = vadd.f32 %v2716, %v2780
      %v2782 = vpop.f32.mrf.mxu0
      %v2783 = vpop.f32.mrf.mxu0
      %v2784 = vadd.f32 %v2719, %v2783
      %v2785 = vpop.f32.mrf.mxu0
      %2786 = vmatprep.mubr.bf16.mxu0 %v2204
      %2787 = vmatmul.mubr.bf16.gmra.mxu0 %v2203
      %v2788 = vpop.f32.mrf.mxu0
      %v2789 = vadd.f32 %v2724, %v2788
      %v2790 = vpop.f32.mrf.mxu0
      %v2791 = vpop.f32.mrf.mxu0
      %v2792 = vadd.f32 %v2727, %v2791
      %v2793 = vpop.f32.mrf.mxu0
      %2794 = vmatprep.mubr.bf16.mxu0 %v2210
      %2795 = vmatmul.mubr.bf16.gmra.mxu0 %v2209
      %v2796 = vpop.f32.mrf.mxu0
      %v2797 = vadd.f32 %v2732, %v2796
      %v2798 = vpop.f32.mrf.mxu0
      %v2799 = vpop.f32.mrf.mxu0
      %v2800 = vadd.f32 %v2735, %v2799
      %v2801 = vpop.f32.mrf.mxu0
      %2802 = vmatprep.mubr.bf16.mxu0 %v2216
      %2803 = vmatmul.mubr.bf16.gmra.mxu0 %v2215
      %v2804 = vpop.f32.mrf.mxu0
      %v2805 = vadd.f32 %v2740, %v2804
      %v2806 = vpop.f32.mrf.mxu0
      %v2807 = vpop.f32.mrf.mxu0
      %v2808 = vadd.f32 %v2743, %v2807
      %v2809 = vpop.f32.mrf.mxu0
      %2810 = vdwg.mxu0
      %2811 = vmatprep.subr.bf16.mxu0 0
      %2812 = vmatpush1.bf16.msra.mxu0 %v2576
      %2813 = vmatprep.subr.bf16.mxu0 0
      %2814 = vmatpush1.bf16.msra.mxu0 %v2575
      %2815 = vmatprep.subr.bf16.mxu0 0
      %2816 = vmatpush1.bf16.msra.mxu0 %v2574
      %2817 = vmatprep.subr.bf16.mxu0 0
      %2818 = vmatpush1.bf16.msra.mxu0 %v2573
      %2819 = vmatprep.subr.bf16.mxu0 0
      %2820 = vmatpush1.bf16.msra.mxu0 %v2572
      %2821 = vmatprep.subr.bf16.mxu0 0
      %2822 = vmatpush1.bf16.msra.mxu0 %v2571
      %2823 = vmatprep.subr.bf16.mxu0 0
      %2824 = vmatpush1.bf16.msra.mxu0 %v2570
      %2825 = vmatprep.subr.bf16.mxu0 0
      %2826 = vmatpush1.bf16.msra.mxu0 %v2569
      %2827 = vmatprep.subr.bf16.mxu0 0
      %2828 = vmatpush2.bf16.msra.mxu0 %v2584
      %2829 = vmatprep.subr.bf16.mxu0 0
      %2830 = vmatpush2.bf16.msra.mxu0 %v2583
      %2831 = vmatprep.subr.bf16.mxu0 0
      %2832 = vmatpush2.bf16.msra.mxu0 %v2582
      %2833 = vmatprep.subr.bf16.mxu0 0
      %2834 = vmatpush2.bf16.msra.mxu0 %v2581
      %2835 = vmatprep.subr.bf16.mxu0 0
      %2836 = vmatpush2.bf16.msra.mxu0 %v2580
      %2837 = vmatprep.subr.bf16.mxu0 0
      %2838 = vmatpush2.bf16.msra.mxu0 %v2579
      %2839 = vmatprep.subr.bf16.mxu0 0
      %2840 = vmatpush2.bf16.msra.mxu0 %v2578
      %2841 = vmatprep.subr.bf16.mxu0 0
      %2842 = vmatpush2.bf16.msra.mxu0 %v2577
      %2843 = vmatprep.mubr.bf16.mxu0 %v2200
      %2844 = vmatmul.mubr.bf16.gmra.mxu0 %v2199
      %v2845 = vpop.f32.mrf.mxu0
      %v2846 = vadd.f32 %v2781, %v2845
      %v2847 = vpop.f32.mrf.mxu0
      %v2848 = vpop.f32.mrf.mxu0
      %v2849 = vadd.f32 %v2784, %v2848
      %v2850 = vpop.f32.mrf.mxu0
      %2851 = vmatprep.mubr.bf16.mxu0 %v2206
      %2852 = vmatmul.mubr.bf16.gmra.mxu0 %v2205
      %v2853 = vpop.f32.mrf.mxu0
      %v2854 = vadd.f32 %v2789, %v2853
      %v2855 = vpop.f32.mrf.mxu0
      %v2856 = vpop.f32.mrf.mxu0
      %v2857 = vadd.f32 %v2792, %v2856
      %v2858 = vpop.f32.mrf.mxu0
      %2859 = vmatprep.mubr.bf16.mxu0 %v2212
      %2860 = vmatmul.mubr.bf16.gmra.mxu0 %v2211
      %v2861 = vpop.f32.mrf.mxu0
      %v2862 = vadd.f32 %v2797, %v2861
      %v2863 = vpop.f32.mrf.mxu0
      %v2864 = vpop.f32.mrf.mxu0
      %v2865 = vadd.f32 %v2800, %v2864
      %v2866 = vpop.f32.mrf.mxu0
      %2867 = vmatprep.mubr.bf16.mxu0 %v2218
      %2868 = vmatmul.mubr.bf16.gmra.mxu0 %v2217
      %v2869 = vpop.f32.mrf.mxu0
      %v2870 = vadd.f32 %v2805, %v2869
      %v2871 = vpop.f32.mrf.mxu0
      %v2872 = vpop.f32.mrf.mxu0
      %v2873 = vadd.f32 %v2808, %v2872
      %v2874 = vpop.f32.mrf.mxu0
      %2875 = vdwg.mxu0
      %2876 = vmatprep.subr.bf16.mxu0 0
      %2877 = vmatpush1.bf16.msra.mxu0 %v2592
      %2878 = vmatprep.subr.bf16.mxu0 0
      %2879 = vmatpush1.bf16.msra.mxu0 %v2591
      %2880 = vmatprep.subr.bf16.mxu0 0
      %2881 = vmatpush1.bf16.msra.mxu0 %v2590
      %2882 = vmatprep.subr.bf16.mxu0 0
      %2883 = vmatpush1.bf16.msra.mxu0 %v2589
      %2884 = vmatprep.subr.bf16.mxu0 0
      %2885 = vmatpush1.bf16.msra.mxu0 %v2588
      %2886 = vmatprep.subr.bf16.mxu0 0
      %2887 = vmatpush1.bf16.msra.mxu0 %v2587
      %2888 = vmatprep.subr.bf16.mxu0 0
      %2889 = vmatpush1.bf16.msra.mxu0 %v2586
      %2890 = vmatprep.subr.bf16.mxu0 0
      %2891 = vmatpush1.bf16.msra.mxu0 %v2585
      %2892 = vmatprep.subr.bf16.mxu0 0
      %2893 = vmatpush2.bf16.msra.mxu0 %v2600
      %2894 = vmatprep.subr.bf16.mxu0 0
      %2895 = vmatpush2.bf16.msra.mxu0 %v2599
      %2896 = vmatprep.subr.bf16.mxu0 0
      %2897 = vmatpush2.bf16.msra.mxu0 %v2598
      %2898 = vmatprep.subr.bf16.mxu0 0
      %2899 = vmatpush2.bf16.msra.mxu0 %v2597
      %2900 = vmatprep.subr.bf16.mxu0 0
      %2901 = vmatpush2.bf16.msra.mxu0 %v2596
      %2902 = vmatprep.subr.bf16.mxu0 0
      %2903 = vmatpush2.bf16.msra.mxu0 %v2595
      %2904 = vmatprep.subr.bf16.mxu0 0
      %2905 = vmatpush2.bf16.msra.mxu0 %v2594
      %2906 = vmatprep.subr.bf16.mxu0 0
      %2907 = vmatpush2.bf16.msra.mxu0 %v2593
      %2908 = vmatprep.mubr.bf16.mxu0 %v2202
      %2909 = vmatmul.mubr.bf16.gmra.mxu0 %v2201
      %v2910 = vpop.f32.mrf.mxu0
      %v2911 = vadd.f32 %v2846, %v2910
      %v2912 = vpop.f32.mrf.mxu0
      %v2913 = vpop.f32.mrf.mxu0
      %v2914 = vadd.f32 %v2849, %v2913
      %v2915 = vpop.f32.mrf.mxu0
      %2916 = vmatprep.mubr.bf16.mxu0 %v2208
      %2917 = vmatmul.mubr.bf16.gmra.mxu0 %v2207
      %v2918 = vpop.f32.mrf.mxu0
      %v2919 = vadd.f32 %v2854, %v2918
      %v2920 = vpop.f32.mrf.mxu0
      %v2921 = vpop.f32.mrf.mxu0
      %v2922 = vadd.f32 %v2857, %v2921
      %v2923 = vpop.f32.mrf.mxu0
      %2924 = vmatprep.mubr.bf16.mxu0 %v2214
      %2925 = vmatmul.mubr.bf16.gmra.mxu0 %v2213
      %v2926 = vpop.f32.mrf.mxu0
      %v2927 = vadd.f32 %v2862, %v2926
      %v2928 = vpop.f32.mrf.mxu0
      %v2929 = vpop.f32.mrf.mxu0
      %v2930 = vadd.f32 %v2865, %v2929
      %v2931 = vpop.f32.mrf.mxu0
      %2932 = vmatprep.mubr.bf16.mxu0 %v2220
      %2933 = vmatmul.mubr.bf16.gmra.mxu0 %v2219
      %v2934 = vpop.f32.mrf.mxu0
      %v2935 = vadd.f32 %v2870, %v2934
      %v2936 = vpop.f32.mrf.mxu0
      %v2937 = vpop.f32.mrf.mxu0
      %v2938 = vadd.f32 %v2873, %v2937
      %v2939 = vpop.f32.mrf.mxu0
      %2940 = vdwg.mxu0
      %2941 = vmatprep.subr.bf16.mxu0 0
      %2942 = vmatpush1.bf16.msra.mxu0 %v2608
      %2943 = vmatprep.subr.bf16.mxu0 0
      %2944 = vmatpush1.bf16.msra.mxu0 %v2607
      %2945 = vmatprep.subr.bf16.mxu0 0
      %2946 = vmatpush1.bf16.msra.mxu0 %v2606
      %2947 = vmatprep.subr.bf16.mxu0 0
      %2948 = vmatpush1.bf16.msra.mxu0 %v2605
      %2949 = vmatprep.subr.bf16.mxu0 0
      %2950 = vmatpush1.bf16.msra.mxu0 %v2604
      %2951 = vmatprep.subr.bf16.mxu0 0
      %2952 = vmatpush1.bf16.msra.mxu0 %v2603
      %2953 = vmatprep.subr.bf16.mxu0 0
      %2954 = vmatpush1.bf16.msra.mxu0 %v2602
      %2955 = vmatprep.subr.bf16.mxu0 0
      %2956 = vmatpush1.bf16.msra.mxu0 %v2601
      %2957 = vmatprep.subr.bf16.mxu0 0
      %2958 = vmatpush2.bf16.msra.mxu0 0
      %2959 = vmatprep.subr.bf16.mxu0 0
      %2960 = vmatpush2.bf16.msra.mxu0 0
      %2961 = vmatprep.subr.bf16.mxu0 0
      %2962 = vmatpush2.bf16.msra.mxu0 0
      %2963 = vmatprep.subr.bf16.mxu0 0
      %2964 = vmatpush2.bf16.msra.mxu0 0
      %2965 = vmatprep.subr.bf16.mxu0 0
      %2966 = vmatpush2.bf16.msra.mxu0 0
      %2967 = vmatprep.subr.bf16.mxu0 0
      %2968 = vmatpush2.bf16.msra.mxu0 0
      %2969 = vmatprep.subr.bf16.mxu0 0
      %2970 = vmatpush2.bf16.msra.mxu0 0
      %2971 = vmatprep.subr.bf16.mxu0 0
      %2972 = vmatpush2.bf16.msra.mxu0 0
      %2973 = vmatprep.mubr.bf16.mxu0 0
      %2974 = vmatmul.mubr.bf16.gmra.mxu0 %v2203
      %v2975 = vpop.f32.mrf.mxu0
      %v2976 = vadd.f32 %v2911, %v2975
      %v2977 = vpop.f32.mrf.mxu0
      %v2978 = vpop.f32.mrf.mxu0
      %v2979 = vadd.f32 %v2914, %v2978
      %v2980 = vpop.f32.mrf.mxu0
      %2981 = vmatprep.mubr.bf16.mxu0 0
      %2982 = vmatmul.mubr.bf16.gmra.mxu0 %v2209
      %v2983 = vpop.f32.mrf.mxu0
      %v2984 = vadd.f32 %v2919, %v2983
      %v2985 = vpop.f32.mrf.mxu0
      %v2986 = vpop.f32.mrf.mxu0
      %v2987 = vadd.f32 %v2922, %v2986
      %v2988 = vpop.f32.mrf.mxu0
      %2989 = vmatprep.mubr.bf16.mxu0 0
      %2990 = vmatmul.mubr.bf16.gmra.mxu0 %v2215
      %v2991 = vpop.f32.mrf.mxu0
      %v2992 = vadd.f32 %v2927, %v2991
      %v2993 = vpop.f32.mrf.mxu0
      %v2994 = vpop.f32.mrf.mxu0
      %v2995 = vadd.f32 %v2930, %v2994
      %v2996 = vpop.f32.mrf.mxu0
      %2997 = vmatprep.mubr.bf16.mxu0 0
      %2998 = vmatmul.mubr.bf16.gmra.mxu0 %v2221
      %v2999 = vpop.f32.mrf.mxu0
      %v3000 = vadd.f32 %v2935, %v2999
      %v3001 = vpop.f32.mrf.mxu0
      %v3002 = vpop.f32.mrf.mxu0
      %v3003 = vadd.f32 %v2938, %v3002
      %v3004 = vpop.f32.mrf.mxu0
      %3005 = vdwg.mxu0
      %v3006 = vadd.f32 %v2976, %v1811
      %v3007 = vadd.f32 %v2979, %v1814
      %v3008 = vadd.f32 %v2984, %v1819
      %v3009 = vadd.f32 %v2987, %v1822
      %v3010 = vadd.f32 %v2992, %v1827
      %v3011 = vadd.f32 %v2995, %v1830
      %v3012 = vadd.f32 %v3000, %v1835
      %v3013 = vadd.f32 %v3003, %v1838
      %v3014 = vmax.f32 %v3006, 0.0
      %v3015 = vmax.f32 %v3007, 0.0
      %v3016 = vmax.f32 %v3008, 0.0
      %v3017 = vmax.f32 %v3009, 0.0
      %v3018 = vmax.f32 %v3010, 0.0
      %v3019 = vmax.f32 %v3011, 0.0
      %v3020 = vmax.f32 %v3012, 0.0
      %v3021 = vmax.f32 %v3013, 0.0
      %v3022 = vpack.c.bf16 %v3014, %v3014
      %v3023 = vpack.c.bf16 %v3015, %v3015
      %v3024 = vpack.c.bf16 %v3016, %v3016
      %v3025 = vpack.c.bf16 %v3017, %v3017
      %v3026 = vpack.c.bf16 %v3018, %v3018
      %v3027 = vpack.c.bf16 %v3019, %v3019
      %v3028 = vpack.c.bf16 %v3020, %v3020
      %v3029 = vpack.c.bf16 %v3021, %v3021
      %3030 = vst [vmem:[%s278] sm:$0xf] %v3022
      %3031 = vst [vmem:[%s278 + $0x4] sm:$0xf] %v3023
      %3032 = vst [vmem:[%s278 + $0x8] sm:$0xf] %v3024
      %3033 = vst [vmem:[%s278 + $0xc] sm:$0xf] %v3025
      %3034 = vst [vmem:[%s278 + $0x10] sm:$0xf] %v3026
      %3035 = vst [vmem:[%s278 + $0x14] sm:$0xf] %v3027
      %3036 = vst [vmem:[%s278 + $0x18] sm:$0xf] %v3028
      %3037 = vst [vmem:[%s278 + $0x1c] sm:$0xf] %v3029
      %p3038 = scmp.lt.s32.totalorder %s18, 1
      %s3039 = scalar_select %p3038, %s18, 1
      %s3040 = smul.addr %s3039, 8
      %s3041 = smul.addr %s3040, 4
      %s3042 = scalar_lea.vmem %s7, %s3041
      // Predicated region
      $region49: #{residual_block_forward.1} parent=47 // pred_check
        %p3043 = pneg %p188
      $region50: #{residual_block_forward.1} parent=47 // pred_check_branch
        %3045 = sbr.rel (%p3043) target = $region52
      $region51: #{residual_block_forward.1} parent=47 // pred_region
        _
      $region52: #{residual_block_forward.1} parent=47 // pred_fallthru
        _
    $region48: #{residual_block_forward.1} parent=5 // pred_fallthru
      _
    %p3046 = scmp.le.s32.totalorder 2, %s13
    // Predicated region
    $region53: #{residual_block_forward.1} parent=5 // pred_check
      %p3047 = pneg %p3046
    $region54: #{residual_block_forward.1} parent=5 // pred_check_branch
      %3049 = sbr.rel (%p3047) target = $region56
    $region55: #{residual_block_forward.1} parent=5 // pred_region
      %s3050 = ssub.s32 %s13, 2
      // Predicated region
      $region57: #{residual_block_forward.1} parent=55 // pred_check
        %p3051 = pneg %p194
      $region58: #{residual_block_forward.1} parent=55 // pred_check_branch
        %3053 = sbr.rel (%p3051) target = $region60
      $region59: #{residual_block_forward.1} parent=55 // pred_region
        %p3054 = scmp.lt.s32.totalorder %s19, 1
        %s3055 = scalar_select %p3054, %s19, 1
        %s3056 = smul.addr %s3055, 8
        %s3057 = smul.addr %s3056, 4
        %s3058 = scalar_lea.vmem %s7, %s3057
      $region60: #{residual_block_forward.1} parent=55 // pred_fallthru
        _
    $region56: #{residual_block_forward.1} parent=5 // pred_fallthru
      _
  $region6: #{residual_block_forward.1} parent=0 // loop_footer
    %s17 = sadd.s32 1, %s13
  $region7: #{residual_block_forward.1} parent=0 // loop_footer_branch
    %12 = sbr.rel target = $region3
  $region8: #{residual_block_forward.1} parent=0 // loop_exit
    _

</llo_original>
